<compile_context>
chip_gen: v6e
topology: v6e:2x2x1
jax: 0.10.0
libtpu: 0.0.40
codegen_flags: <defaults>
</compile_context>

<pallas_src>
import functools

import jax
import jax.numpy as jnp
from jax import lax
from jax.experimental import pallas as pl
from jax.experimental.pallas import tpu as pltpu


def _gru_kernel(xw_ref, uzr_hbm, uh_hbm, out_ref,
                uzr_vmem, uh_vmem, h_scratch, w_sem,
                *, hidden_size, time_block, unroll):
    """One grid step = `time_block` timesteps of the recurrence for one batch tile.

    xw_ref   : (B_blk, T_blk, 3H) precomputed input projections (VMEM block)
    uzr_hbm  : (H, 2H) fused [U_z | U_r] weights, left in HBM
    uh_hbm   : (H, H)  U_h weights, left in HBM
    out_ref  : (B_blk, H) final hidden state for this batch tile
    uzr_vmem, uh_vmem : VMEM scratch for the recurrent weights (loaded once/tile)
    h_scratch: (B_blk, H) f32 hidden state, persistent across the time grid axis
    w_sem    : (2,) DMA semaphores for the weight copies
    """
    H = hidden_size
    t_idx = pl.program_id(1)

    @pl.when(t_idx == 0)
    def _init():
        # Start the once-per-batch-tile weight DMAs, overlap them with the
        # h0 = 0 init, then wait (async instead of serializing sync_copy).
        cp_zr = pltpu.make_async_copy(uzr_hbm, uzr_vmem, w_sem.at[0])
        cp_h = pltpu.make_async_copy(uh_hbm, uh_vmem, w_sem.at[1])
        cp_zr.start()
        cp_h.start()
        h_scratch[...] = jnp.zeros_like(h_scratch)   # h0 = 0, as in the module
        cp_zr.wait()
        cp_h.wait()

    cdt = uzr_vmem.dtype  # dtype fed to the MXU (bf16 by default, f32 on request)

    def step(tt, h):
        # xp = [Wz x + bz | Wr x + br | Wh x + bh]  for timestep tt
        xp = xw_ref[:, tt].astype(jnp.float32)                    # (B_blk, 3H)
        hzr = jnp.dot(h.astype(cdt), uzr_vmem[...],
                      preferred_element_type=jnp.float32)         # (B_blk, 2H)
        z = jax.nn.sigmoid(xp[:, :H] + hzr[:, :H])
        r = jax.nn.sigmoid(xp[:, H:2 * H] + hzr[:, H:])
        rh = (r * h).astype(cdt)
        h_tilde = jnp.tanh(
            xp[:, 2 * H:]
            + jnp.dot(rh, uh_vmem[...], preferred_element_type=jnp.float32))
        # (1 - z) * h_tilde + z * h, rewritten with one fewer VPU op.
        return h_tilde + z * (h - h_tilde)

    h_final = lax.fori_loop(0, time_block, step, h_scratch[...], unroll=unroll)
    h_scratch[...] = h_final

    @pl.when(t_idx == pl.num_programs(1) - 1)
    def _finalize():
        out_ref[...] = h_final.astype(out_ref.dtype)


def _vmem_capacity_bytes():
    """Per-TensorCore VMEM capacity; conservative 64 MiB (v7x) fallback."""
    try:
        info = pltpu.get_tpu_info()
        cap = getattr(info, "vmem_capacity_bytes", None)
        if cap:
            return int(cap)
    except Exception:
        pass
    return 64 << 20


def _round_up(n, m):
    return ((n + m - 1) // m) * m


def gru_forward(inputs, params, *, time_block=None, batch_block=None,
                compute_dtype=jnp.bfloat16, xw_buffers=None,
                core_parallel=False):
    """inputs: (batch, seq_len, input_size) -> (batch, hidden_size).

    compute_dtype: streaming/MXU dtype (bf16 default; accumulation is f32).
    xw_buffers:    optional pipeline depth for the xw stream (e.g. 3 on v5e).
    core_parallel: use pltpu.CORE_PARALLEL on the batch axis (v7x, 2 TCs).
    """
    B, S, I = inputs.shape
    H = params["wz"].shape[1]
    itemsize = jnp.dtype(compute_dtype).itemsize
    sub = 8 if itemsize >= 4 else (16 if itemsize == 2 else 32)

    # --- fuse the gate weights ----------------------------------------------
    w_all = jnp.concatenate([params["wz"], params["wr"], params["wh"]], axis=1)  # (I, 3H)
    b_all = jnp.concatenate([params["bz"], params["br"], params["bh"]], axis=1)  # (1, 3H)
    u_zr = jnp.concatenate([params["uz"], params["ur"]], axis=1).astype(compute_dtype)  # (H, 2H)
    u_h = params["uh"].astype(compute_dtype)                                            # (H, H)

    # --- hoist the input projections out of the recurrence -------------------
    # Natural (B, S, 3H) layout: no host-side (S, B) transpose of the largest
    # tensor.  Accumulate in f32, stream in compute_dtype (bf16 by default).
    xw = (jnp.einsum("bsi,ih->bsh",
                     inputs.astype(compute_dtype), w_all.astype(compute_dtype),
                     preferred_element_type=jnp.float32)
          + b_all).astype(compute_dtype)                                         # (B, S, 3H)

    # --- blocking, sized against the real per-core VMEM budget ---------------
    if batch_block is None:
        batch_block = B
    assert B % batch_block == 0, "batch_block must divide batch"
    assert batch_block == B or batch_block % sub == 0, \
        "batch tile must be sublane-aligned (16 for bf16) or the full batch"

    vmem_cap = _vmem_capacity_bytes()
    budget = int(0.75 * (vmem_cap - (8 << 20)))          # leave headroom

    uzr_bytes = _round_up(H, sub) * _round_up(2 * H, 128) * itemsize
    uh_bytes = _round_up(H, sub) * _round_up(H, 128) * itemsize
    h_bytes = _round_up(batch_block, 8) * _round_up(H, 128) * 4

    def xw_block_bytes(tb):
        return batch_block * _round_up(tb, sub) * _round_up(3 * H, 128) * itemsize

    # time_block candidates: divisors of S that are sublane-aligned (8 f32 /
    # 16 bf16) or the whole sequence (full-extent blocks are always legal).
    cands = [d for d in range(1, S + 1)
             if S % d == 0 and (d == S or d % sub == 0)]
    if time_block is None:
        fits = [d for d in cands
                if d <= 64 and
                2 * xw_block_bytes(d) + uzr_bytes + uh_bytes + h_bytes <= budget]
        time_block = max(fits) if fits else min(cands)
    assert S % time_block == 0, "time_block must divide seq_len"
    assert time_block == S or time_block % 8 == 0, \
        "time_block must be sublane-aligned or equal seq_len"

    n_b = B // batch_block
    n_t = S // time_block
    # Modest unroll: keeps LLO scheduling visibility without exploding live
    # ranges / vreg spills when time_block is large.
    unroll = time_block if time_block <= 8 else 8

    kernel = functools.partial(_gru_kernel, hidden_size=H,
                               time_block=time_block, unroll=unroll)

    xw_index_map = lambda b, t: (b, t, 0)
    if xw_buffers is None:
        xw_spec = pl.BlockSpec((batch_block, time_block, 3 * H), xw_index_map)
    else:
        # e.g. 3 on v5e to keep the DMA engine ahead of the short per-block compute
        xw_spec = pl.BlockSpec((batch_block, time_block, 3 * H), xw_index_map,
                               pipeline_mode=pl.Buffered(xw_buffers))

    grid_spec = pltpu.PrefetchScalarGridSpec(
        num_scalar_prefetch=0,
        grid=(n_b, n_t),
        in_specs=[
            xw_spec,                               # streamed projections
            pl.BlockSpec(memory_space=pl.ANY),     # U_zr stays in HBM
            pl.BlockSpec(memory_space=pl.ANY),     # U_h  stays in HBM
        ],
        out_specs=pl.BlockSpec((batch_block, H), lambda b, t: (b, 0)),
        scratch_shapes=[
            pltpu.VMEM((H, 2 * H), compute_dtype),     # U_zr (single-buffered)
            pltpu.VMEM((H, H), compute_dtype),         # U_h  (single-buffered)
            pltpu.VMEM((batch_block, H), jnp.float32),  # hidden state (f32)
            pltpu.SemaphoreType.DMA((2,)),              # weight-copy semaphores
        ],
    )

    nbuf = 2 if xw_buffers is None else xw_buffers
    vmem_need = (nbuf * xw_block_bytes(time_block)
                 + uzr_bytes + uh_bytes + h_bytes + (4 << 20))
    # Clamp to the chip's physical capacity (64 MiB/TC on v7x) minus headroom.
    vmem_limit = int(min(max(vmem_need, 32 << 20), vmem_cap - (8 << 20)))

    batch_sem = pltpu.CORE_PARALLEL if core_parallel else "parallel"

    return pl.pallas_call(
        kernel,
        out_shape=jax.ShapeDtypeStruct((B, H), inputs.dtype),
        grid_spec=grid_spec,
        compiler_params=pltpu.CompilerParams(
            dimension_semantics=(batch_sem, "arbitrary"),
            vmem_limit_bytes=vmem_limit),
    )(xw, u_zr, u_h)


def init_params(key, input_size, hidden_size):
    """Deterministic synthetic params. nn.Linear weight (out,in) is stored
    transposed as (in,out); biases are kept as (1, hidden) rows."""
    ks = jax.random.split(key, 9)

    def lin_w(k, fan_in, shape):
        bound = 1.0 / jnp.sqrt(fan_in)
        return jax.random.uniform(k, shape, jnp.float32, -bound, bound)

    I, H = input_size, hidden_size
    return {
        "wz": lin_w(ks[0], I, (I, H)), "bz": lin_w(ks[1], I, (1, H)),
        "uz": lin_w(ks[2], H, (H, H)),
        "wr": lin_w(ks[3], I, (I, H)), "br": lin_w(ks[4], I, (1, H)),
        "ur": lin_w(ks[5], H, (H, H)),
        "wh": lin_w(ks[6], I, (I, H)), "bh": lin_w(ks[7], I, (1, H)),
        "uh": lin_w(ks[8], H, (H, H)),
    }


def gru_reference(inputs, params):
    """Pure-JAX reference mirroring the PyTorch forward."""
    B, S, _ = inputs.shape
    H = params["wz"].shape[1]
    h = jnp.zeros((B, H), inputs.dtype)
    for t in range(S):
        x = inputs[:, t, :]
        z = jax.nn.sigmoid(x @ params["wz"] + params["bz"] + h @ params["uz"])
        r = jax.nn.sigmoid(x @ params["wr"] + params["br"] + h @ params["ur"])
        h_tilde = jnp.tanh(x @ params["wh"] + params["bh"]
                           + (r * h) @ params["uh"])
        h = (1.0 - z) * h_tilde + z * h
    return h


if __name__ == "__main__":
    batch, seq_len, input_size, hidden_size = 2, 8, 16, 32

    key = jax.random.PRNGKey(0)
    k_x, k_p = jax.random.split(key)
    inputs = jax.random.normal(k_x, (batch, seq_len, input_size), jnp.float32)
    params = init_params(k_p, input_size, hidden_size)

    ref = gru_reference(inputs, params)

    # f32 streaming path (tight check against the pure-JAX reference).
    out_f32 = jax.block_until_ready(
        gru_forward(inputs, params, compute_dtype=jnp.float32))
    assert out_f32.shape == (batch, hidden_size)
    assert jnp.allclose(out_f32, ref, atol=1e-5, rtol=1e-5), "f32 mismatch vs reference"

    # Default bf16 streaming path (halves the dominant HBM traffic, f32 accum).
    out_bf16 = jax.block_until_ready(gru_forward(inputs, params))
    assert out_bf16.shape == (batch, hidden_size)
    assert jnp.allclose(out_bf16, ref, atol=1e-1, rtol=1e-1), "bf16 mismatch vs reference"

    print("KERNEL_OK")
</pallas_src>

<mosaic_0001>
module attributes {stable_mosaic.version = 11 : i64} {
  func.func @_gru_kernel(%arg0: i32, %arg1: i32, %arg2: memref<2x8x96xf32, #tpu.memory_space<vmem>>, %arg3: memref<32x64xf32, #tpu.memory_space<any>>, %arg4: memref<32x32xf32, #tpu.memory_space<any>>, %arg5: memref<2x32xf32, #tpu.memory_space<vmem>>, %arg6: memref<32x64xf32, #tpu.memory_space<vmem>>, %arg7: memref<32x32xf32, #tpu.memory_space<vmem>>, %arg8: memref<2x32xf32, #tpu.memory_space<vmem>>, %arg9: memref<2x!tpu.dma_semaphore, #tpu.memory_space<semaphore_mem>>) attributes {dimension_semantics = [#tpu.dimension_semantics<parallel>, #tpu.dimension_semantics<arbitrary>], iteration_bounds = array<i64: 1, 1>, scalar_prefetch = 0 : i64, scratch_operands = 4 : i64, tpu.core_type = #tpu.core_type<tc>, window_params = [{transform_indices = @transform_0, window_bounds = array<i64: 2, 8, 96>}, {}, {}, {transform_indices = @transform_3, window_bounds = array<i64: 2, 32>}]} {
    %c0_i32 = arith.constant 0 : i32
    %0 = arith.cmpi eq, %arg1, %c0_i32 : i32
    %1 = arith.extui %0 : i1 to i32
    %c0_i32_0 = arith.constant 0 : i32
    %2 = arith.cmpi ne, %1, %c0_i32_0 : i32
    scf.if %2 {
      %c0_i32_86 = arith.constant 0 : i32
      %248 = tpu.memref_slice %arg9[%c0_i32_86] : memref<2x!tpu.dma_semaphore, #tpu.memory_space<semaphore_mem>> -> memref<1x!tpu.dma_semaphore, #tpu.memory_space<semaphore_mem>>
      %249 = tpu.memref_squeeze %248 : memref<1x!tpu.dma_semaphore, #tpu.memory_space<semaphore_mem>> -> memref<!tpu.dma_semaphore, #tpu.memory_space<semaphore_mem>>
      tpu.enqueue_dma source(%arg3 : memref<32x64xf32, #tpu.memory_space<any>>) target(%arg6 : memref<32x64xf32, #tpu.memory_space<vmem>>) target_semaphore(%249 : memref<!tpu.dma_semaphore, #tpu.memory_space<semaphore_mem>>)
      %c1_i32_87 = arith.constant 1 : i32
      %250 = tpu.memref_slice %arg9[%c1_i32_87] : memref<2x!tpu.dma_semaphore, #tpu.memory_space<semaphore_mem>> -> memref<1x!tpu.dma_semaphore, #tpu.memory_space<semaphore_mem>>
      %251 = tpu.memref_squeeze %250 : memref<1x!tpu.dma_semaphore, #tpu.memory_space<semaphore_mem>> -> memref<!tpu.dma_semaphore, #tpu.memory_space<semaphore_mem>>
      tpu.enqueue_dma source(%arg4 : memref<32x32xf32, #tpu.memory_space<any>>) target(%arg7 : memref<32x32xf32, #tpu.memory_space<vmem>>) target_semaphore(%251 : memref<!tpu.dma_semaphore, #tpu.memory_space<semaphore_mem>>)
      %cst_88 = arith.constant 0.000000e+00 : f32
      %252 = vector.broadcast %cst_88 : f32 to vector<2x32xf32>
      %c0_89 = arith.constant 0 : index
      %c0_90 = arith.constant 0 : index
      %253 = vector.load %arg8[%c0_89, %c0_90] : memref<2x32xf32, #tpu.memory_space<vmem>>, vector<2x32xf32>
      tpu.vector_store %arg8[%c0_89, %c0_90], %252 {strides = array<i32>} : memref<2x32xf32, #tpu.memory_space<vmem>>, vector<2x32xf32>,
      %c0_i32_91 = arith.constant 0 : i32
      %254 = tpu.memref_slice %arg9[%c0_i32_91] : memref<2x!tpu.dma_semaphore, #tpu.memory_space<semaphore_mem>> -> memref<1x!tpu.dma_semaphore, #tpu.memory_space<semaphore_mem>>
      %255 = tpu.memref_squeeze %254 : memref<1x!tpu.dma_semaphore, #tpu.memory_space<semaphore_mem>> -> memref<!tpu.dma_semaphore, #tpu.memory_space<semaphore_mem>>
      tpu.wait_dma2 semaphore(%255 : memref<!tpu.dma_semaphore, #tpu.memory_space<semaphore_mem>>) src(%arg3 : memref<32x64xf32, #tpu.memory_space<any>>) dst(%arg6 : memref<32x64xf32, #tpu.memory_space<vmem>>)
      %c1_i32_92 = arith.constant 1 : i32
      %256 = tpu.memref_slice %arg9[%c1_i32_92] : memref<2x!tpu.dma_semaphore, #tpu.memory_space<semaphore_mem>> -> memref<1x!tpu.dma_semaphore, #tpu.memory_space<semaphore_mem>>
      %257 = tpu.memref_squeeze %256 : memref<1x!tpu.dma_semaphore, #tpu.memory_space<semaphore_mem>> -> memref<!tpu.dma_semaphore, #tpu.memory_space<semaphore_mem>>
      tpu.wait_dma2 semaphore(%257 : memref<!tpu.dma_semaphore, #tpu.memory_space<semaphore_mem>>) src(%arg4 : memref<32x32xf32, #tpu.memory_space<any>>) dst(%arg7 : memref<32x32xf32, #tpu.memory_space<vmem>>)
    } else {
    }
    %c0 = arith.constant 0 : index
    %c0_1 = arith.constant 0 : index
    %3 = vector.load %arg8[%c0, %c0_1] : memref<2x32xf32, #tpu.memory_space<vmem>>, vector<2x32xf32>
    %c0_i32_2 = arith.constant 0 : i32
    %c0_3 = arith.constant 0 : index
    %4 = arith.index_cast %c0_i32_2 : i32 to index
    %c0_4 = arith.constant 0 : index
    %5 = vector.load %arg2[%c0_3, %4, %c0_4] : memref<2x8x96xf32, #tpu.memory_space<vmem>>, vector<2x1x96xf32>
    %6 = vector.shape_cast %5 : vector<2x1x96xf32> to vector<2x96xf32>
    %c0_5 = arith.constant 0 : index
    %c0_6 = arith.constant 0 : index
    %7 = vector.load %arg6[%c0_5, %c0_6] : memref<32x64xf32, #tpu.memory_space<vmem>>, vector<32x64xf32>
    %cst = arith.constant dense<0.000000e+00> : vector<2x64xf32>
    %8 = tpu.matmul %3, %7, %cst {dimension_numbers = #tpu.dot_dimension_numbers<[1], [0], [0], [1], [0, 0, 1, 1], [], []>} : vector<2x32xf32>, vector<32x64xf32>, vector<2x64xf32> -> vector<2x64xf32>
    %9 = vector.extract_strided_slice %6 {offsets = [0, 0], sizes = [2, 32], strides = [1, 1]} : vector<2x96xf32> to vector<2x32xf32>
    %10 = vector.extract_strided_slice %8 {offsets = [0, 0], sizes = [2, 32], strides = [1, 1]} : vector<2x64xf32> to vector<2x32xf32>
    %11 = arith.addf %9, %10 : vector<2x32xf32>
    %12 = arith.negf %11 : vector<2x32xf32>
    %13 = math.exp %12 : vector<2x32xf32>
    %cst_7 = arith.constant 1.000000e+00 : f32
    %14 = vector.broadcast %cst_7 : f32 to vector<2x32xf32>
    %15 = arith.addf %14, %13 : vector<2x32xf32>
    %16 = arith.divf %14, %15 : vector<2x32xf32>
    %17 = vector.extract_strided_slice %6 {offsets = [0, 32], sizes = [2, 32], strides = [1, 1]} : vector<2x96xf32> to vector<2x32xf32>
    %18 = vector.extract_strided_slice %8 {offsets = [0, 32], sizes = [2, 32], strides = [1, 1]} : vector<2x64xf32> to vector<2x32xf32>
    %19 = arith.addf %17, %18 : vector<2x32xf32>
    %20 = arith.negf %19 : vector<2x32xf32>
    %21 = math.exp %20 : vector<2x32xf32>
    %cst_8 = arith.constant 1.000000e+00 : f32
    %22 = vector.broadcast %cst_8 : f32 to vector<2x32xf32>
    %23 = arith.addf %22, %21 : vector<2x32xf32>
    %24 = arith.divf %22, %23 : vector<2x32xf32>
    %25 = arith.mulf %24, %3 : vector<2x32xf32>
    %26 = vector.extract_strided_slice %6 {offsets = [0, 64], sizes = [2, 32], strides = [1, 1]} : vector<2x96xf32> to vector<2x32xf32>
    %c0_9 = arith.constant 0 : index
    %c0_10 = arith.constant 0 : index
    %27 = vector.load %arg7[%c0_9, %c0_10] : memref<32x32xf32, #tpu.memory_space<vmem>>, vector<32x32xf32>
    %cst_11 = arith.constant dense<0.000000e+00> : vector<2x32xf32>
    %28 = tpu.matmul %25, %27, %cst_11 {dimension_numbers = #tpu.dot_dimension_numbers<[1], [0], [0], [1], [0, 0, 1, 1], [], []>} : vector<2x32xf32>, vector<32x32xf32>, vector<2x32xf32> -> vector<2x32xf32>
    %29 = arith.addf %26, %28 : vector<2x32xf32>
    %30 = math.tanh %29 : vector<2x32xf32>
    %31 = arith.subf %3, %30 : vector<2x32xf32>
    %32 = arith.mulf %16, %31 : vector<2x32xf32>
    %33 = arith.addf %30, %32 : vector<2x32xf32>
    %c1_i32 = arith.constant 1 : i32
    %c0_12 = arith.constant 0 : index
    %34 = arith.index_cast %c1_i32 : i32 to index
    %c0_13 = arith.constant 0 : index
    %35 = vector.load %arg2[%c0_12, %34, %c0_13] : memref<2x8x96xf32, #tpu.memory_space<vmem>>, vector<2x1x96xf32>
    %36 = vector.shape_cast %35 : vector<2x1x96xf32> to vector<2x96xf32>
    %c0_14 = arith.constant 0 : index
    %c0_15 = arith.constant 0 : index
    %37 = vector.load %arg6[%c0_14, %c0_15] : memref<32x64xf32, #tpu.memory_space<vmem>>, vector<32x64xf32>
    %cst_16 = arith.constant dense<0.000000e+00> : vector<2x64xf32>
    %38 = tpu.matmul %33, %37, %cst_16 {dimension_numbers = #tpu.dot_dimension_numbers<[1], [0], [0], [1], [0, 0, 1, 1], [], []>} : vector<2x32xf32>, vector<32x64xf32>, vector<2x64xf32> -> vector<2x64xf32>
    %39 = vector.extract_strided_slice %36 {offsets = [0, 0], sizes = [2, 32], strides = [1, 1]} : vector<2x96xf32> to vector<2x32xf32>
    %40 = vector.extract_strided_slice %38 {offsets = [0, 0], sizes = [2, 32], strides = [1, 1]} : vector<2x64xf32> to vector<2x32xf32>
    %41 = arith.addf %39, %40 : vector<2x32xf32>
    %42 = arith.negf %41 : vector<2x32xf32>
    %43 = math.exp %42 : vector<2x32xf32>
    %cst_17 = arith.constant 1.000000e+00 : f32
    %44 = vector.broadcast %cst_17 : f32 to vector<2x32xf32>
    %45 = arith.addf %44, %43 : vector<2x32xf32>
    %46 = arith.divf %44, %45 : vector<2x32xf32>
    %47 = vector.extract_strided_slice %36 {offsets = [0, 32], sizes = [2, 32], strides = [1, 1]} : vector<2x96xf32> to vector<2x32xf32>
    %48 = vector.extract_strided_slice %38 {offsets = [0, 32], sizes = [2, 32], strides = [1, 1]} : vector<2x64xf32> to vector<2x32xf32>
    %49 = arith.addf %47, %48 : vector<2x32xf32>
    %50 = arith.negf %49 : vector<2x32xf32>
    %51 = math.exp %50 : vector<2x32xf32>
    %cst_18 = arith.constant 1.000000e+00 : f32
    %52 = vector.broadcast %cst_18 : f32 to vector<2x32xf32>
    %53 = arith.addf %52, %51 : vector<2x32xf32>
    %54 = arith.divf %52, %53 : vector<2x32xf32>
    %55 = arith.mulf %54, %33 : vector<2x32xf32>
    %56 = vector.extract_strided_slice %36 {offsets = [0, 64], sizes = [2, 32], strides = [1, 1]} : vector<2x96xf32> to vector<2x32xf32>
    %c0_19 = arith.constant 0 : index
    %c0_20 = arith.constant 0 : index
    %57 = vector.load %arg7[%c0_19, %c0_20] : memref<32x32xf32, #tpu.memory_space<vmem>>, vector<32x32xf32>
    %cst_21 = arith.constant dense<0.000000e+00> : vector<2x32xf32>
    %58 = tpu.matmul %55, %57, %cst_21 {dimension_numbers = #tpu.dot_dimension_numbers<[1], [0], [0], [1], [0, 0, 1, 1], [], []>} : vector<2x32xf32>, vector<32x32xf32>, vector<2x32xf32> -> vector<2x32xf32>
    %59 = arith.addf %56, %58 : vector<2x32xf32>
    %60 = math.tanh %59 : vector<2x32xf32>
    %61 = arith.subf %33, %60 : vector<2x32xf32>
    %62 = arith.mulf %46, %61 : vector<2x32xf32>
    %63 = arith.addf %60, %62 : vector<2x32xf32>
    %c2_i32 = arith.constant 2 : i32
    %c0_22 = arith.constant 0 : index
    %64 = arith.index_cast %c2_i32 : i32 to index
    %c0_23 = arith.constant 0 : index
    %65 = vector.load %arg2[%c0_22, %64, %c0_23] : memref<2x8x96xf32, #tpu.memory_space<vmem>>, vector<2x1x96xf32>
    %66 = vector.shape_cast %65 : vector<2x1x96xf32> to vector<2x96xf32>
    %c0_24 = arith.constant 0 : index
    %c0_25 = arith.constant 0 : index
    %67 = vector.load %arg6[%c0_24, %c0_25] : memref<32x64xf32, #tpu.memory_space<vmem>>, vector<32x64xf32>
    %cst_26 = arith.constant dense<0.000000e+00> : vector<2x64xf32>
    %68 = tpu.matmul %63, %67, %cst_26 {dimension_numbers = #tpu.dot_dimension_numbers<[1], [0], [0], [1], [0, 0, 1, 1], [], []>} : vector<2x32xf32>, vector<32x64xf32>, vector<2x64xf32> -> vector<2x64xf32>
    %69 = vector.extract_strided_slice %66 {offsets = [0, 0], sizes = [2, 32], strides = [1, 1]} : vector<2x96xf32> to vector<2x32xf32>
    %70 = vector.extract_strided_slice %68 {offsets = [0, 0], sizes = [2, 32], strides = [1, 1]} : vector<2x64xf32> to vector<2x32xf32>
    %71 = arith.addf %69, %70 : vector<2x32xf32>
    %72 = arith.negf %71 : vector<2x32xf32>
    %73 = math.exp %72 : vector<2x32xf32>
    %cst_27 = arith.constant 1.000000e+00 : f32
    %74 = vector.broadcast %cst_27 : f32 to vector<2x32xf32>
    %75 = arith.addf %74, %73 : vector<2x32xf32>
    %76 = arith.divf %74, %75 : vector<2x32xf32>
    %77 = vector.extract_strided_slice %66 {offsets = [0, 32], sizes = [2, 32], strides = [1, 1]} : vector<2x96xf32> to vector<2x32xf32>
    %78 = vector.extract_strided_slice %68 {offsets = [0, 32], sizes = [2, 32], strides = [1, 1]} : vector<2x64xf32> to vector<2x32xf32>
    %79 = arith.addf %77, %78 : vector<2x32xf32>
    %80 = arith.negf %79 : vector<2x32xf32>
    %81 = math.exp %80 : vector<2x32xf32>
    %cst_28 = arith.constant 1.000000e+00 : f32
    %82 = vector.broadcast %cst_28 : f32 to vector<2x32xf32>
    %83 = arith.addf %82, %81 : vector<2x32xf32>
    %84 = arith.divf %82, %83 : vector<2x32xf32>
    %85 = arith.mulf %84, %63 : vector<2x32xf32>
    %86 = vector.extract_strided_slice %66 {offsets = [0, 64], sizes = [2, 32], strides = [1, 1]} : vector<2x96xf32> to vector<2x32xf32>
    %c0_29 = arith.constant 0 : index
    %c0_30 = arith.constant 0 : index
    %87 = vector.load %arg7[%c0_29, %c0_30] : memref<32x32xf32, #tpu.memory_space<vmem>>, vector<32x32xf32>
    %cst_31 = arith.constant dense<0.000000e+00> : vector<2x32xf32>
    %88 = tpu.matmul %85, %87, %cst_31 {dimension_numbers = #tpu.dot_dimension_numbers<[1], [0], [0], [1], [0, 0, 1, 1], [], []>} : vector<2x32xf32>, vector<32x32xf32>, vector<2x32xf32> -> vector<2x32xf32>
    %89 = arith.addf %86, %88 : vector<2x32xf32>
    %90 = math.tanh %89 : vector<2x32xf32>
    %91 = arith.subf %63, %90 : vector<2x32xf32>
    %92 = arith.mulf %76, %91 : vector<2x32xf32>
    %93 = arith.addf %90, %92 : vector<2x32xf32>
    %c3_i32 = arith.constant 3 : i32
    %c0_32 = arith.constant 0 : index
    %94 = arith.index_cast %c3_i32 : i32 to index
    %c0_33 = arith.constant 0 : index
    %95 = vector.load %arg2[%c0_32, %94, %c0_33] : memref<2x8x96xf32, #tpu.memory_space<vmem>>, vector<2x1x96xf32>
    %96 = vector.shape_cast %95 : vector<2x1x96xf32> to vector<2x96xf32>
    %c0_34 = arith.constant 0 : index
    %c0_35 = arith.constant 0 : index
    %97 = vector.load %arg6[%c0_34, %c0_35] : memref<32x64xf32, #tpu.memory_space<vmem>>, vector<32x64xf32>
    %cst_36 = arith.constant dense<0.000000e+00> : vector<2x64xf32>
    %98 = tpu.matmul %93, %97, %cst_36 {dimension_numbers = #tpu.dot_dimension_numbers<[1], [0], [0], [1], [0, 0, 1, 1], [], []>} : vector<2x32xf32>, vector<32x64xf32>, vector<2x64xf32> -> vector<2x64xf32>
    %99 = vector.extract_strided_slice %96 {offsets = [0, 0], sizes = [2, 32], strides = [1, 1]} : vector<2x96xf32> to vector<2x32xf32>
    %100 = vector.extract_strided_slice %98 {offsets = [0, 0], sizes = [2, 32], strides = [1, 1]} : vector<2x64xf32> to vector<2x32xf32>
    %101 = arith.addf %99, %100 : vector<2x32xf32>
    %102 = arith.negf %101 : vector<2x32xf32>
    %103 = math.exp %102 : vector<2x32xf32>
    %cst_37 = arith.constant 1.000000e+00 : f32
    %104 = vector.broadcast %cst_37 : f32 to vector<2x32xf32>
    %105 = arith.addf %104, %103 : vector<2x32xf32>
    %106 = arith.divf %104, %105 : vector<2x32xf32>
    %107 = vector.extract_strided_slice %96 {offsets = [0, 32], sizes = [2, 32], strides = [1, 1]} : vector<2x96xf32> to vector<2x32xf32>
    %108 = vector.extract_strided_slice %98 {offsets = [0, 32], sizes = [2, 32], strides = [1, 1]} : vector<2x64xf32> to vector<2x32xf32>
    %109 = arith.addf %107, %108 : vector<2x32xf32>
    %110 = arith.negf %109 : vector<2x32xf32>
    %111 = math.exp %110 : vector<2x32xf32>
    %cst_38 = arith.constant 1.000000e+00 : f32
    %112 = vector.broadcast %cst_38 : f32 to vector<2x32xf32>
    %113 = arith.addf %112, %111 : vector<2x32xf32>
    %114 = arith.divf %112, %113 : vector<2x32xf32>
    %115 = arith.mulf %114, %93 : vector<2x32xf32>
    %116 = vector.extract_strided_slice %96 {offsets = [0, 64], sizes = [2, 32], strides = [1, 1]} : vector<2x96xf32> to vector<2x32xf32>
    %c0_39 = arith.constant 0 : index
    %c0_40 = arith.constant 0 : index
    %117 = vector.load %arg7[%c0_39, %c0_40] : memref<32x32xf32, #tpu.memory_space<vmem>>, vector<32x32xf32>
    %cst_41 = arith.constant dense<0.000000e+00> : vector<2x32xf32>
    %118 = tpu.matmul %115, %117, %cst_41 {dimension_numbers = #tpu.dot_dimension_numbers<[1], [0], [0], [1], [0, 0, 1, 1], [], []>} : vector<2x32xf32>, vector<32x32xf32>, vector<2x32xf32> -> vector<2x32xf32>
    %119 = arith.addf %116, %118 : vector<2x32xf32>
    %120 = math.tanh %119 : vector<2x32xf32>
    %121 = arith.subf %93, %120 : vector<2x32xf32>
    %122 = arith.mulf %106, %121 : vector<2x32xf32>
    %123 = arith.addf %120, %122 : vector<2x32xf32>
    %c4_i32 = arith.constant 4 : i32
    %c0_42 = arith.constant 0 : index
    %124 = arith.index_cast %c4_i32 : i32 to index
    %c0_43 = arith.constant 0 : index
    %125 = vector.load %arg2[%c0_42, %124, %c0_43] : memref<2x8x96xf32, #tpu.memory_space<vmem>>, vector<2x1x96xf32>
    %126 = vector.shape_cast %125 : vector<2x1x96xf32> to vector<2x96xf32>
    %c0_44 = arith.constant 0 : index
    %c0_45 = arith.constant 0 : index
    %127 = vector.load %arg6[%c0_44, %c0_45] : memref<32x64xf32, #tpu.memory_space<vmem>>, vector<32x64xf32>
    %cst_46 = arith.constant dense<0.000000e+00> : vector<2x64xf32>
    %128 = tpu.matmul %123, %127, %cst_46 {dimension_numbers = #tpu.dot_dimension_numbers<[1], [0], [0], [1], [0, 0, 1, 1], [], []>} : vector<2x32xf32>, vector<32x64xf32>, vector<2x64xf32> -> vector<2x64xf32>
    %129 = vector.extract_strided_slice %126 {offsets = [0, 0], sizes = [2, 32], strides = [1, 1]} : vector<2x96xf32> to vector<2x32xf32>
    %130 = vector.extract_strided_slice %128 {offsets = [0, 0], sizes = [2, 32], strides = [1, 1]} : vector<2x64xf32> to vector<2x32xf32>
    %131 = arith.addf %129, %130 : vector<2x32xf32>
    %132 = arith.negf %131 : vector<2x32xf32>
    %133 = math.exp %132 : vector<2x32xf32>
    %cst_47 = arith.constant 1.000000e+00 : f32
    %134 = vector.broadcast %cst_47 : f32 to vector<2x32xf32>
    %135 = arith.addf %134, %133 : vector<2x32xf32>
    %136 = arith.divf %134, %135 : vector<2x32xf32>
    %137 = vector.extract_strided_slice %126 {offsets = [0, 32], sizes = [2, 32], strides = [1, 1]} : vector<2x96xf32> to vector<2x32xf32>
    %138 = vector.extract_strided_slice %128 {offsets = [0, 32], sizes = [2, 32], strides = [1, 1]} : vector<2x64xf32> to vector<2x32xf32>
    %139 = arith.addf %137, %138 : vector<2x32xf32>
    %140 = arith.negf %139 : vector<2x32xf32>
    %141 = math.exp %140 : vector<2x32xf32>
    %cst_48 = arith.constant 1.000000e+00 : f32
    %142 = vector.broadcast %cst_48 : f32 to vector<2x32xf32>
    %143 = arith.addf %142, %141 : vector<2x32xf32>
    %144 = arith.divf %142, %143 : vector<2x32xf32>
    %145 = arith.mulf %144, %123 : vector<2x32xf32>
    %146 = vector.extract_strided_slice %126 {offsets = [0, 64], sizes = [2, 32], strides = [1, 1]} : vector<2x96xf32> to vector<2x32xf32>
    %c0_49 = arith.constant 0 : index
    %c0_50 = arith.constant 0 : index
    %147 = vector.load %arg7[%c0_49, %c0_50] : memref<32x32xf32, #tpu.memory_space<vmem>>, vector<32x32xf32>
    %cst_51 = arith.constant dense<0.000000e+00> : vector<2x32xf32>
    %148 = tpu.matmul %145, %147, %cst_51 {dimension_numbers = #tpu.dot_dimension_numbers<[1], [0], [0], [1], [0, 0, 1, 1], [], []>} : vector<2x32xf32>, vector<32x32xf32>, vector<2x32xf32> -> vector<2x32xf32>
    %149 = arith.addf %146, %148 : vector<2x32xf32>
    %150 = math.tanh %149 : vector<2x32xf32>
    %151 = arith.subf %123, %150 : vector<2x32xf32>
    %152 = arith.mulf %136, %151 : vector<2x32xf32>
    %153 = arith.addf %150, %152 : vector<2x32xf32>
    %c5_i32 = arith.constant 5 : i32
    %c0_52 = arith.constant 0 : index
    %154 = arith.index_cast %c5_i32 : i32 to index
    %c0_53 = arith.constant 0 : index
    %155 = vector.load %arg2[%c0_52, %154, %c0_53] : memref<2x8x96xf32, #tpu.memory_space<vmem>>, vector<2x1x96xf32>
    %156 = vector.shape_cast %155 : vector<2x1x96xf32> to vector<2x96xf32>
    %c0_54 = arith.constant 0 : index
    %c0_55 = arith.constant 0 : index
    %157 = vector.load %arg6[%c0_54, %c0_55] : memref<32x64xf32, #tpu.memory_space<vmem>>, vector<32x64xf32>
    %cst_56 = arith.constant dense<0.000000e+00> : vector<2x64xf32>
    %158 = tpu.matmul %153, %157, %cst_56 {dimension_numbers = #tpu.dot_dimension_numbers<[1], [0], [0], [1], [0, 0, 1, 1], [], []>} : vector<2x32xf32>, vector<32x64xf32>, vector<2x64xf32> -> vector<2x64xf32>
    %159 = vector.extract_strided_slice %156 {offsets = [0, 0], sizes = [2, 32], strides = [1, 1]} : vector<2x96xf32> to vector<2x32xf32>
    %160 = vector.extract_strided_slice %158 {offsets = [0, 0], sizes = [2, 32], strides = [1, 1]} : vector<2x64xf32> to vector<2x32xf32>
    %161 = arith.addf %159, %160 : vector<2x32xf32>
    %162 = arith.negf %161 : vector<2x32xf32>
    %163 = math.exp %162 : vector<2x32xf32>
    %cst_57 = arith.constant 1.000000e+00 : f32
    %164 = vector.broadcast %cst_57 : f32 to vector<2x32xf32>
    %165 = arith.addf %164, %163 : vector<2x32xf32>
    %166 = arith.divf %164, %165 : vector<2x32xf32>
    %167 = vector.extract_strided_slice %156 {offsets = [0, 32], sizes = [2, 32], strides = [1, 1]} : vector<2x96xf32> to vector<2x32xf32>
    %168 = vector.extract_strided_slice %158 {offsets = [0, 32], sizes = [2, 32], strides = [1, 1]} : vector<2x64xf32> to vector<2x32xf32>
    %169 = arith.addf %167, %168 : vector<2x32xf32>
    %170 = arith.negf %169 : vector<2x32xf32>
    %171 = math.exp %170 : vector<2x32xf32>
    %cst_58 = arith.constant 1.000000e+00 : f32
    %172 = vector.broadcast %cst_58 : f32 to vector<2x32xf32>
    %173 = arith.addf %172, %171 : vector<2x32xf32>
    %174 = arith.divf %172, %173 : vector<2x32xf32>
    %175 = arith.mulf %174, %153 : vector<2x32xf32>
    %176 = vector.extract_strided_slice %156 {offsets = [0, 64], sizes = [2, 32], strides = [1, 1]} : vector<2x96xf32> to vector<2x32xf32>
    %c0_59 = arith.constant 0 : index
    %c0_60 = arith.constant 0 : index
    %177 = vector.load %arg7[%c0_59, %c0_60] : memref<32x32xf32, #tpu.memory_space<vmem>>, vector<32x32xf32>
    %cst_61 = arith.constant dense<0.000000e+00> : vector<2x32xf32>
    %178 = tpu.matmul %175, %177, %cst_61 {dimension_numbers = #tpu.dot_dimension_numbers<[1], [0], [0], [1], [0, 0, 1, 1], [], []>} : vector<2x32xf32>, vector<32x32xf32>, vector<2x32xf32> -> vector<2x32xf32>
    %179 = arith.addf %176, %178 : vector<2x32xf32>
    %180 = math.tanh %179 : vector<2x32xf32>
    %181 = arith.subf %153, %180 : vector<2x32xf32>
    %182 = arith.mulf %166, %181 : vector<2x32xf32>
    %183 = arith.addf %180, %182 : vector<2x32xf32>
    %c6_i32 = arith.constant 6 : i32
    %c0_62 = arith.constant 0 : index
    %184 = arith.index_cast %c6_i32 : i32 to index
    %c0_63 = arith.constant 0 : index
    %185 = vector.load %arg2[%c0_62, %184, %c0_63] : memref<2x8x96xf32, #tpu.memory_space<vmem>>, vector<2x1x96xf32>
    %186 = vector.shape_cast %185 : vector<2x1x96xf32> to vector<2x96xf32>
    %c0_64 = arith.constant 0 : index
    %c0_65 = arith.constant 0 : index
    %187 = vector.load %arg6[%c0_64, %c0_65] : memref<32x64xf32, #tpu.memory_space<vmem>>, vector<32x64xf32>
    %cst_66 = arith.constant dense<0.000000e+00> : vector<2x64xf32>
    %188 = tpu.matmul %183, %187, %cst_66 {dimension_numbers = #tpu.dot_dimension_numbers<[1], [0], [0], [1], [0, 0, 1, 1], [], []>} : vector<2x32xf32>, vector<32x64xf32>, vector<2x64xf32> -> vector<2x64xf32>
    %189 = vector.extract_strided_slice %186 {offsets = [0, 0], sizes = [2, 32], strides = [1, 1]} : vector<2x96xf32> to vector<2x32xf32>
    %190 = vector.extract_strided_slice %188 {offsets = [0, 0], sizes = [2, 32], strides = [1, 1]} : vector<2x64xf32> to vector<2x32xf32>
    %191 = arith.addf %189, %190 : vector<2x32xf32>
    %192 = arith.negf %191 : vector<2x32xf32>
    %193 = math.exp %192 : vector<2x32xf32>
    %cst_67 = arith.constant 1.000000e+00 : f32
    %194 = vector.broadcast %cst_67 : f32 to vector<2x32xf32>
    %195 = arith.addf %194, %193 : vector<2x32xf32>
    %196 = arith.divf %194, %195 : vector<2x32xf32>
    %197 = vector.extract_strided_slice %186 {offsets = [0, 32], sizes = [2, 32], strides = [1, 1]} : vector<2x96xf32> to vector<2x32xf32>
    %198 = vector.extract_strided_slice %188 {offsets = [0, 32], sizes = [2, 32], strides = [1, 1]} : vector<2x64xf32> to vector<2x32xf32>
    %199 = arith.addf %197, %198 : vector<2x32xf32>
    %200 = arith.negf %199 : vector<2x32xf32>
    %201 = math.exp %200 : vector<2x32xf32>
    %cst_68 = arith.constant 1.000000e+00 : f32
    %202 = vector.broadcast %cst_68 : f32 to vector<2x32xf32>
    %203 = arith.addf %202, %201 : vector<2x32xf32>
    %204 = arith.divf %202, %203 : vector<2x32xf32>
    %205 = arith.mulf %204, %183 : vector<2x32xf32>
    %206 = vector.extract_strided_slice %186 {offsets = [0, 64], sizes = [2, 32], strides = [1, 1]} : vector<2x96xf32> to vector<2x32xf32>
    %c0_69 = arith.constant 0 : index
    %c0_70 = arith.constant 0 : index
    %207 = vector.load %arg7[%c0_69, %c0_70] : memref<32x32xf32, #tpu.memory_space<vmem>>, vector<32x32xf32>
    %cst_71 = arith.constant dense<0.000000e+00> : vector<2x32xf32>
    %208 = tpu.matmul %205, %207, %cst_71 {dimension_numbers = #tpu.dot_dimension_numbers<[1], [0], [0], [1], [0, 0, 1, 1], [], []>} : vector<2x32xf32>, vector<32x32xf32>, vector<2x32xf32> -> vector<2x32xf32>
    %209 = arith.addf %206, %208 : vector<2x32xf32>
    %210 = math.tanh %209 : vector<2x32xf32>
    %211 = arith.subf %183, %210 : vector<2x32xf32>
    %212 = arith.mulf %196, %211 : vector<2x32xf32>
    %213 = arith.addf %210, %212 : vector<2x32xf32>
    %c7_i32 = arith.constant 7 : i32
    %c0_72 = arith.constant 0 : index
    %214 = arith.index_cast %c7_i32 : i32 to index
    %c0_73 = arith.constant 0 : index
    %215 = vector.load %arg2[%c0_72, %214, %c0_73] : memref<2x8x96xf32, #tpu.memory_space<vmem>>, vector<2x1x96xf32>
    %216 = vector.shape_cast %215 : vector<2x1x96xf32> to vector<2x96xf32>
    %c0_74 = arith.constant 0 : index
    %c0_75 = arith.constant 0 : index
    %217 = vector.load %arg6[%c0_74, %c0_75] : memref<32x64xf32, #tpu.memory_space<vmem>>, vector<32x64xf32>
    %cst_76 = arith.constant dense<0.000000e+00> : vector<2x64xf32>
    %218 = tpu.matmul %213, %217, %cst_76 {dimension_numbers = #tpu.dot_dimension_numbers<[1], [0], [0], [1], [0, 0, 1, 1], [], []>} : vector<2x32xf32>, vector<32x64xf32>, vector<2x64xf32> -> vector<2x64xf32>
    %219 = vector.extract_strided_slice %216 {offsets = [0, 0], sizes = [2, 32], strides = [1, 1]} : vector<2x96xf32> to vector<2x32xf32>
    %220 = vector.extract_strided_slice %218 {offsets = [0, 0], sizes = [2, 32], strides = [1, 1]} : vector<2x64xf32> to vector<2x32xf32>
    %221 = arith.addf %219, %220 : vector<2x32xf32>
    %222 = arith.negf %221 : vector<2x32xf32>
    %223 = math.exp %222 : vector<2x32xf32>
    %cst_77 = arith.constant 1.000000e+00 : f32
    %224 = vector.broadcast %cst_77 : f32 to vector<2x32xf32>
    %225 = arith.addf %224, %223 : vector<2x32xf32>
    %226 = arith.divf %224, %225 : vector<2x32xf32>
    %227 = vector.extract_strided_slice %216 {offsets = [0, 32], sizes = [2, 32], strides = [1, 1]} : vector<2x96xf32> to vector<2x32xf32>
    %228 = vector.extract_strided_slice %218 {offsets = [0, 32], sizes = [2, 32], strides = [1, 1]} : vector<2x64xf32> to vector<2x32xf32>
    %229 = arith.addf %227, %228 : vector<2x32xf32>
    %230 = arith.negf %229 : vector<2x32xf32>
    %231 = math.exp %230 : vector<2x32xf32>
    %cst_78 = arith.constant 1.000000e+00 : f32
    %232 = vector.broadcast %cst_78 : f32 to vector<2x32xf32>
    %233 = arith.addf %232, %231 : vector<2x32xf32>
    %234 = arith.divf %232, %233 : vector<2x32xf32>
    %235 = arith.mulf %234, %213 : vector<2x32xf32>
    %236 = vector.extract_strided_slice %216 {offsets = [0, 64], sizes = [2, 32], strides = [1, 1]} : vector<2x96xf32> to vector<2x32xf32>
    %c0_79 = arith.constant 0 : index
    %c0_80 = arith.constant 0 : index
    %237 = vector.load %arg7[%c0_79, %c0_80] : memref<32x32xf32, #tpu.memory_space<vmem>>, vector<32x32xf32>
    %cst_81 = arith.constant dense<0.000000e+00> : vector<2x32xf32>
    %238 = tpu.matmul %235, %237, %cst_81 {dimension_numbers = #tpu.dot_dimension_numbers<[1], [0], [0], [1], [0, 0, 1, 1], [], []>} : vector<2x32xf32>, vector<32x32xf32>, vector<2x32xf32> -> vector<2x32xf32>
    %239 = arith.addf %236, %238 : vector<2x32xf32>
    %240 = math.tanh %239 : vector<2x32xf32>
    %241 = arith.subf %213, %240 : vector<2x32xf32>
    %242 = arith.mulf %226, %241 : vector<2x32xf32>
    %243 = arith.addf %240, %242 : vector<2x32xf32>
    %c8_i32 = arith.constant 8 : i32
    %c0_82 = arith.constant 0 : index
    %c0_83 = arith.constant 0 : index
    %244 = vector.load %arg8[%c0_82, %c0_83] : memref<2x32xf32, #tpu.memory_space<vmem>>, vector<2x32xf32>
    tpu.vector_store %arg8[%c0_82, %c0_83], %243 {strides = array<i32>} : memref<2x32xf32, #tpu.memory_space<vmem>>, vector<2x32xf32>,
    %c0_i32_84 = arith.constant 0 : i32
    %245 = arith.cmpi eq, %arg1, %c0_i32_84 : i32
    %246 = arith.extui %245 : i1 to i32
    %c0_i32_85 = arith.constant 0 : i32
    %247 = arith.cmpi ne, %246, %c0_i32_85 : i32
    scf.if %247 {
      %c0_86 = arith.constant 0 : index
      %c0_87 = arith.constant 0 : index
      %248 = vector.load %arg5[%c0_86, %c0_87] : memref<2x32xf32, #tpu.memory_space<vmem>>, vector<2x32xf32>
      tpu.vector_store %arg5[%c0_86, %c0_87], %243 {strides = array<i32>} : memref<2x32xf32, #tpu.memory_space<vmem>>, vector<2x32xf32>,
    } else {
    }
    return
  }
  func.func @transform_0(%arg0: i32, %arg1: i32) -> (i32, i32, i32) {
    %c0_i32 = arith.constant 0 : i32
    %c0_i32_0 = arith.constant 0 : i32
    return %arg0, %arg1, %c0_i32 : i32, i32, i32
  }
  func.func @transform_3(%arg0: i32, %arg1: i32) -> (i32, i32) {
    %c0_i32 = arith.constant 0 : i32
    %c0_i32_0 = arith.constant 0 : i32
    return %arg0, %c0_i32 : i32, i32
  }
}

</mosaic_0001>

<llo_original>
// kernel: tpu_custom_call.1
$region0: #{tpu_custom_call.1}
  #allocation0 [shape = 'u32[]', space=smem, size = 0x4, offset = 0x4, fixed_abs, tag = 'smem constant byte address 0x4 - core index']
  #allocation1 [shape = 'u32[144,128]{1,0:T(1,128)}', space=vmem, size = 0x12000, scoped, tag = 'internal scratch']
  #allocation2 [shape = 'f32[32,64]{1,0:T(8,128)}', space=vmem, size = 0x4000, scoped, tag = 'scratch operand']
  #allocation3 [shape = 'f32[32,32]{1,0:T(8,128)}', space=vmem, size = 0x4000, scoped, tag = 'scratch operand']
  #allocation4 [shape = 'f32[2,32]{1,0:T(2,128)}', space=vmem, size = 0x400, scoped, tag = 'scratch operand']
  #allocation5 [shape = 's32[2]{0}', space=sflag, size = 0x8, scoped, tag = 'scratch operand']
  #allocation10 [shape = 's32[]', space=sflag, size = 0x4, offset = 0, fixed_abs, tag = 'sflag constant byte address 0x0 - dummy sync flag']
  #allocation11 [shape = 's32[]', space=sflag, size = 0x4, offset = 0, fixed_abs, tag = 'sflag constant byte address 0x0 - dummy sync flag']
  #allocation12 [shape = 'u32[]', space=smem, size = 0x4, offset = 0x44, fixed_abs, tag = 'smem constant byte address 0x44 - assertion arg 0']
  #allocation13 [shape = 'u32[]', space=smem, size = 0x4, offset = 0x48, fixed_abs, tag = 'smem constant byte address 0x48 - assertion arg 1']
  #allocation14 [shape = 's32[]', space=sflag, size = 0x4, offset = 0, fixed_abs, tag = 'sflag constant byte address 0x0 - dummy sync flag']
  #allocation15 [shape = 's32[]', space=sflag, size = 0x4, offset = 0, fixed_abs, tag = 'sflag constant byte address 0x0 - dummy sync flag']
  %s0 = inlined_call_operand.hbm [shape: f32[2,8,96], index: 0, kind: input, shape index: {}]
  %s1 = inlined_call_operand.hbm [shape: f32[32,64], index: 1, kind: input, shape index: {}]
  %s2 = inlined_call_operand.hbm [shape: f32[32,32], index: 2, kind: input, shape index: {}]
  %s3 = inlined_call_operand.hbm [shape: f32[2,32], index: 3, kind: output, shape index: {}]
  %s4 = sld [smem:[#allocation0]]
  $region34: #{tpu_custom_call.1} parent=0
    _
  %s6 = ssub.s32 1, %s4
  %s7 = scalar_select 0, %s6, %s4
  $region1: #{tpu_custom_call.1} parent=0
    #allocation6 [shape = 'u8[8192]{0}', space=vmem, size = 0x2000, scoped, tag = 'input window, operand 0, single buffered']
    #allocation7 [shape = 's32[1]{0}', space=sflag, size = 0x4, scoped, tag = 'scoped memory for tpu_custom_call.1']
    #allocation8 [shape = 's32[1]{0}', space=sflag, size = 0x4, scoped, tag = 'scoped memory for tpu_custom_call.1']
    #allocation9 [shape = 'u8[1024]{0}', space=vmem, size = 0x400, scoped, tag = 'output window, operand 0, single buffered']
    %8 = vsyncpa [#allocation7], 0
    %9 = vsyncpa [#allocation8], 0
    // Predicated region
    $region2: #{tpu_custom_call.1} parent=1 // pred_check
      _
    $region3: #{tpu_custom_call.1} parent=1 // pred_check_branch
      %11 = sbr.rel (0) target = $region5
    $region4: #{tpu_custom_call.1} parent=1 // pred_region
      %s13 = ssub.s32 256, 256
      %14 = vsyncadd [#allocation7], %s13
      %s15 = sshll.u32 [#allocation6], 4
      %s16 = int_to_ptr.vmem [resolvable:$true] %s15
      %21 = dma.hbm_to_vmem [thread:$0]  %s0, 256, %s16, [#allocation7], 128, 128, 8
    $region5: #{tpu_custom_call.1} parent=1 // pred_fallthru
      _
    // Predicated region
    $region6: #{tpu_custom_call.1} parent=1 // pred_check
      _
    $region7: #{tpu_custom_call.1} parent=1 // pred_check_branch
      %23 = sbr.rel (0) target = $region9
    $region8: #{tpu_custom_call.1} parent=1 // pred_region
      %24 = dma.done [#allocation7], 256
    $region9: #{tpu_custom_call.1} parent=1 // pred_fallthru
      _
    %p25 = scmp.eq.s32.totalorder 0, 0
    // Predicated region
    $region10: #{tpu_custom_call.1} parent=1 // pred_check
      %p26 = pneg %p25
    $region11: #{tpu_custom_call.1} parent=1 // pred_check_branch
      %28 = sbr.rel (%p26) target = $region13
    $region12: #{tpu_custom_call.1} parent=1 // pred_region
      // Predicated region
      $region14: #{tpu_custom_call.1} parent=12 // pred_check
        _
      $region15: #{tpu_custom_call.1} parent=12 // pred_check_branch
        %30 = sbr.rel target = $region17
      $region16: #{tpu_custom_call.1} parent=12 // pred_region
        %31 = sst [smem:[#allocation12]] [#allocation11]
        %32 = sst [smem:[#allocation13]] [#allocation10]
      $region17: #{tpu_custom_call.1} parent=12 // pred_fallthru
        _
      %34 = shalt.err (0)
      %s36 = sshll.u32 [#allocation2], 4
      %s37 = int_to_ptr.vmem [resolvable:$true] %s36
      %39 = dma.hbm_to_vmem [thread:$0]  %s1, 512, %s37, [#allocation5]
      %s40 = scalar_lea.sflag [#allocation5], 1
      // Predicated region
      $region18: #{tpu_custom_call.1} parent=12 // pred_check
        _
      $region19: #{tpu_custom_call.1} parent=12 // pred_check_branch
        %42 = sbr.rel target = $region21
      $region20: #{tpu_custom_call.1} parent=12 // pred_region
        %43 = sst [smem:[#allocation12]] [#allocation15]
        %44 = sst [smem:[#allocation13]] [#allocation14]
      $region21: #{tpu_custom_call.1} parent=12 // pred_fallthru
        _
      %46 = shalt.err (0)
      %s48 = sshll.u32 [#allocation3], 4
      %s49 = int_to_ptr.vmem [resolvable:$true] %s48
      %51 = dma.hbm_to_vmem [thread:$0]  %s2, 512, %s49, %s40
      %vm52 = vcmask 254976
      %53 = vst.msk [vmem:[#allocation4] sm:$0x3] %vm52, 0.0
      %s54 = smul.u32 32, 1
      %s55 = sshll.u32 %s54, 4
      %56 = dma.done [#allocation5], %s55
      %s57 = sshll.u32 %s54, 4
      %58 = dma.done %s40, %s57
    $region13: #{tpu_custom_call.1} parent=1 // pred_fallthru
      _
    %v59 = vld [vmem:[#allocation4] sm:$0x3]
    %v60 = vld [vmem:[#allocation6] sm:$0x1]
    %v61 = vld [vmem:[#allocation6 + $0x8] sm:$0x1]
    %v62 = vld [vmem:[#allocation2] sm:$0xff]
    %v63 = vld [vmem:[#allocation2 + $0x8] sm:$0xff]
    %v64 = vld [vmem:[#allocation2 + $0x10] sm:$0xff]
    %v65 = vld [vmem:[#allocation2 + $0x18] sm:$0xff]
    %vm66 = vcmask 261120
    %v68 = vsel %vm66, %v59, 0
    %70 = vmatprep.subr.mxu0 0.0
    %71 = vmatpush1.msra.mxu0 0.0
    %72 = vmatprep.subr.mxu0 0.0
    %73 = vmatpush1.msra.mxu0 0.0
    %74 = vmatprep.subr.mxu0 0.0
    %75 = vmatpush1.msra.mxu0 0.0
    %76 = vmatprep.subr.mxu0 0.0
    %77 = vmatpush1.msra.mxu0 0.0
    %78 = vmatprep.subr.mxu0 0.0
    %79 = vmatpush1.msra.mxu0 0.0
    %80 = vmatprep.subr.mxu0 0.0
    %81 = vmatpush1.msra.mxu0 0.0
    %82 = vmatprep.subr.mxu0 0.0
    %83 = vmatpush1.msra.mxu0 0.0
    %84 = vmatprep.subr.mxu0 0.0
    %85 = vmatpush1.msra.mxu0 0.0
    %86 = vmatprep.subr.mxu0 0.0
    %87 = vmatpush1.msra.mxu0 0.0
    %88 = vmatprep.subr.mxu0 0.0
    %89 = vmatpush1.msra.mxu0 0.0
    %90 = vmatprep.subr.mxu0 0.0
    %91 = vmatpush1.msra.mxu0 0.0
    %92 = vmatprep.subr.mxu0 0.0
    %93 = vmatpush1.msra.mxu0 0.0
    %94 = vmatprep.subr.mxu0 0.0
    %95 = vmatpush1.msra.mxu0 %v65
    %96 = vmatprep.subr.mxu0 0.0
    %97 = vmatpush1.msra.mxu0 %v64
    %98 = vmatprep.subr.mxu0 0.0
    %99 = vmatpush1.msra.mxu0 %v63
    %100 = vmatprep.subr.mxu0 0.0
    %101 = vmatpush1.msra.mxu0 %v62
    %102 = vmatprep.subr.mxu0 0.0
    %103 = vmatpush2.msra.mxu0 0.0
    %104 = vmatprep.subr.mxu0 0.0
    %105 = vmatpush2.msra.mxu0 0.0
    %106 = vmatprep.subr.mxu0 0.0
    %107 = vmatpush2.msra.mxu0 0.0
    %108 = vmatprep.subr.mxu0 0.0
    %109 = vmatpush2.msra.mxu0 0.0
    %110 = vmatprep.subr.mxu0 0.0
    %111 = vmatpush2.msra.mxu0 0.0
    %112 = vmatprep.subr.mxu0 0.0
    %113 = vmatpush2.msra.mxu0 0.0
    %114 = vmatprep.subr.mxu0 0.0
    %115 = vmatpush2.msra.mxu0 0.0
    %116 = vmatprep.subr.mxu0 0.0
    %117 = vmatpush2.msra.mxu0 0.0
    %118 = vmatprep.subr.mxu0 0.0
    %119 = vmatpush2.msra.mxu0 0.0
    %120 = vmatprep.subr.mxu0 0.0
    %121 = vmatpush2.msra.mxu0 0.0
    %122 = vmatprep.subr.mxu0 0.0
    %123 = vmatpush2.msra.mxu0 0.0
    %124 = vmatprep.subr.mxu0 0.0
    %125 = vmatpush2.msra.mxu0 0.0
    %126 = vmatprep.subr.mxu0 0.0
    %127 = vmatpush2.msra.mxu0 0.0
    %128 = vmatprep.subr.mxu0 0.0
    %129 = vmatpush2.msra.mxu0 0.0
    %130 = vmatprep.subr.mxu0 0.0
    %131 = vmatpush2.msra.mxu0 0.0
    %132 = vmatprep.subr.mxu0 0.0
    %133 = vmatpush2.msra.mxu0 0.0
    %134 = vmatprep.mubr.f32.mxu0 0.0
    %135 = vmatmul.mubr.f32.gmra.mxu0 %v68
    %v136 = vpop.f32.mrf.mxu0
    %v137 = vadd.f32 0.0, %v136
    %v138 = vpop.f32.mrf.mxu0
    %139 = vdwg.mxu0
    %v141 = vrot.slane %v137, 1
    %v144 = vadd.f32 %v60, %v137
    %v145 = vadd.f32 %v61, %v141
    %v146 = vxor.u32 %v144, 2147483648
    %v147 = vxor.u32 %v145, 2147483648
    %v148 = vmul.f32 %v146, 1.442695
    %v149 = vpow.pop %v148
    %v150 = vmul.f32 %v147, 1.442695
    %v151 = vpow.pop %v150
    %v152 = vadd.f32 %v149, 1.0
    %v153 = vadd.f32 %v151, 1.0
    %v154 = vrcp.pop %v152
    %v155 = vmul.f32 1.0, %v154
    %v156 = vrcp.pop %v153
    %v157 = vmul.f32 1.0, %v156
    %v158 = vrot.slane %v59, 1
    %159 = vrot.lane.b32.xlu0 %v59, 32
    %v160 = vpop.permute.xlu0 %159
    %161 = vrot.lane.b32.xlu0 %v158, 32
    %v162 = vpop.permute.xlu0 %161
    %v165 = vmul.f32 %v155, %v160
    %v166 = vmul.f32 %v157, %v162
    %v167 = vld [vmem:[#allocation3] sm:$0xff]
    %v168 = vld [vmem:[#allocation3 + $0x8] sm:$0xff]
    %v169 = vld [vmem:[#allocation3 + $0x10] sm:$0xff]
    %v170 = vld [vmem:[#allocation3 + $0x18] sm:$0xff]
    %v173 = vrot.slane %v166, 7
    %vm174 = vcmask 1041409
    %v175 = vsel %vm174, %v173, %v165
    %176 = vrot.lane.b32.xlu0 %v175, 96
    %v177 = vpop.permute.xlu0 %176
    %v178 = vsel %vm66, %v177, 0
    %180 = vmatprep.subr.mxu0 0.0
    %181 = vmatpush1.msra.mxu0 0.0
    %182 = vmatprep.subr.mxu0 0.0
    %183 = vmatpush1.msra.mxu0 0.0
    %184 = vmatprep.subr.mxu0 0.0
    %185 = vmatpush1.msra.mxu0 0.0
    %186 = vmatprep.subr.mxu0 0.0
    %187 = vmatpush1.msra.mxu0 0.0
    %188 = vmatprep.subr.mxu0 0.0
    %189 = vmatpush1.msra.mxu0 0.0
    %190 = vmatprep.subr.mxu0 0.0
    %191 = vmatpush1.msra.mxu0 0.0
    %192 = vmatprep.subr.mxu0 0.0
    %193 = vmatpush1.msra.mxu0 0.0
    %194 = vmatprep.subr.mxu0 0.0
    %195 = vmatpush1.msra.mxu0 0.0
    %196 = vmatprep.subr.mxu0 0.0
    %197 = vmatpush1.msra.mxu0 0.0
    %198 = vmatprep.subr.mxu0 0.0
    %199 = vmatpush1.msra.mxu0 0.0
    %200 = vmatprep.subr.mxu0 0.0
    %201 = vmatpush1.msra.mxu0 0.0
    %202 = vmatprep.subr.mxu0 0.0
    %203 = vmatpush1.msra.mxu0 0.0
    %204 = vmatprep.subr.mxu0 0.0
    %205 = vmatpush1.msra.mxu0 %v170
    %206 = vmatprep.subr.mxu0 0.0
    %207 = vmatpush1.msra.mxu0 %v169
    %208 = vmatprep.subr.mxu0 0.0
    %209 = vmatpush1.msra.mxu0 %v168
    %210 = vmatprep.subr.mxu0 0.0
    %211 = vmatpush1.msra.mxu0 %v167
    %212 = vmatprep.subr.mxu0 0.0
    %213 = vmatpush2.msra.mxu0 0.0
    %214 = vmatprep.subr.mxu0 0.0
    %215 = vmatpush2.msra.mxu0 0.0
    %216 = vmatprep.subr.mxu0 0.0
    %217 = vmatpush2.msra.mxu0 0.0
    %218 = vmatprep.subr.mxu0 0.0
    %219 = vmatpush2.msra.mxu0 0.0
    %220 = vmatprep.subr.mxu0 0.0
    %221 = vmatpush2.msra.mxu0 0.0
    %222 = vmatprep.subr.mxu0 0.0
    %223 = vmatpush2.msra.mxu0 0.0
    %224 = vmatprep.subr.mxu0 0.0
    %225 = vmatpush2.msra.mxu0 0.0
    %226 = vmatprep.subr.mxu0 0.0
    %227 = vmatpush2.msra.mxu0 0.0
    %228 = vmatprep.subr.mxu0 0.0
    %229 = vmatpush2.msra.mxu0 0.0
    %230 = vmatprep.subr.mxu0 0.0
    %231 = vmatpush2.msra.mxu0 0.0
    %232 = vmatprep.subr.mxu0 0.0
    %233 = vmatpush2.msra.mxu0 0.0
    %234 = vmatprep.subr.mxu0 0.0
    %235 = vmatpush2.msra.mxu0 0.0
    %236 = vmatprep.subr.mxu0 0.0
    %237 = vmatpush2.msra.mxu0 0.0
    %238 = vmatprep.subr.mxu0 0.0
    %239 = vmatpush2.msra.mxu0 0.0
    %240 = vmatprep.subr.mxu0 0.0
    %241 = vmatpush2.msra.mxu0 0.0
    %242 = vmatprep.subr.mxu0 0.0
    %243 = vmatpush2.msra.mxu0 0.0
    %244 = vmatprep.mubr.f32.mxu0 0.0
    %245 = vmatmul.mubr.f32.gmra.mxu0 %v178
    %v246 = vpop.f32.mrf.mxu0
    %v247 = vadd.f32 0.0, %v246
    %v248 = vpop.f32.mrf.mxu0
    %249 = vdwg.mxu0
    %v251 = vrot.slane %v247, 1
    %252 = vrot.lane.b32.xlu0 %v247, 64
    %v253 = vpop.permute.xlu0 %252
    %254 = vrot.lane.b32.xlu0 %v251, 64
    %v255 = vpop.permute.xlu0 %254
    %v258 = vadd.f32 %v60, %v253
    %v259 = vadd.f32 %v61, %v255
    %v260 = vtanh.pop %v258
    %v261 = vtanh.pop %v259
    %v264 = vrot.slane %v261, 7
    %v265 = vsel %vm174, %v264, %v260
    %266 = vrot.lane.b32.xlu0 %v265, 64
    %v267 = vpop.permute.xlu0 %266
    %v269 = vsub.f32 %v59, %v267
    %v271 = vrot.slane %v269, 1
    %v274 = vmul.f32 %v155, %v269
    %v275 = vmul.f32 %v157, %v271
    %278 = vrot.lane.b32.xlu0 %v274, 64
    %v279 = vpop.permute.xlu0 %278
    %280 = vrot.lane.b32.xlu0 %v275, 64
    %v281 = vpop.permute.xlu0 %280
    %v284 = vadd.f32 %v260, %v279
    %v285 = vadd.f32 %v261, %v281
    %v286 = vld [vmem:[#allocation6 + $0x1] sm:$0x1]
    %v287 = vld [vmem:[#allocation6 + $0x9] sm:$0x1]
    %v290 = vrot.slane %v285, 7
    %v291 = vsel %vm174, %v290, %v284
    %292 = vrot.lane.b32.xlu0 %v291, 64
    %v293 = vpop.permute.xlu0 %292
    %v294 = vsel %vm66, %v293, 0
    %296 = vmatprep.subr.mxu0 0.0
    %297 = vmatpush1.msra.mxu0 0.0
    %298 = vmatprep.subr.mxu0 0.0
    %299 = vmatpush1.msra.mxu0 0.0
    %300 = vmatprep.subr.mxu0 0.0
    %301 = vmatpush1.msra.mxu0 0.0
    %302 = vmatprep.subr.mxu0 0.0
    %303 = vmatpush1.msra.mxu0 0.0
    %304 = vmatprep.subr.mxu0 0.0
    %305 = vmatpush1.msra.mxu0 0.0
    %306 = vmatprep.subr.mxu0 0.0
    %307 = vmatpush1.msra.mxu0 0.0
    %308 = vmatprep.subr.mxu0 0.0
    %309 = vmatpush1.msra.mxu0 0.0
    %310 = vmatprep.subr.mxu0 0.0
    %311 = vmatpush1.msra.mxu0 0.0
    %312 = vmatprep.subr.mxu0 0.0
    %313 = vmatpush1.msra.mxu0 0.0
    %314 = vmatprep.subr.mxu0 0.0
    %315 = vmatpush1.msra.mxu0 0.0
    %316 = vmatprep.subr.mxu0 0.0
    %317 = vmatpush1.msra.mxu0 0.0
    %318 = vmatprep.subr.mxu0 0.0
    %319 = vmatpush1.msra.mxu0 0.0
    %320 = vmatprep.subr.mxu0 0.0
    %321 = vmatpush1.msra.mxu0 %v65
    %322 = vmatprep.subr.mxu0 0.0
    %323 = vmatpush1.msra.mxu0 %v64
    %324 = vmatprep.subr.mxu0 0.0
    %325 = vmatpush1.msra.mxu0 %v63
    %326 = vmatprep.subr.mxu0 0.0
    %327 = vmatpush1.msra.mxu0 %v62
    %328 = vmatprep.subr.mxu0 0.0
    %329 = vmatpush2.msra.mxu0 0.0
    %330 = vmatprep.subr.mxu0 0.0
    %331 = vmatpush2.msra.mxu0 0.0
    %332 = vmatprep.subr.mxu0 0.0
    %333 = vmatpush2.msra.mxu0 0.0
    %334 = vmatprep.subr.mxu0 0.0
    %335 = vmatpush2.msra.mxu0 0.0
    %336 = vmatprep.subr.mxu0 0.0
    %337 = vmatpush2.msra.mxu0 0.0
    %338 = vmatprep.subr.mxu0 0.0
    %339 = vmatpush2.msra.mxu0 0.0
    %340 = vmatprep.subr.mxu0 0.0
    %341 = vmatpush2.msra.mxu0 0.0
    %342 = vmatprep.subr.mxu0 0.0
    %343 = vmatpush2.msra.mxu0 0.0
    %344 = vmatprep.subr.mxu0 0.0
    %345 = vmatpush2.msra.mxu0 0.0
    %346 = vmatprep.subr.mxu0 0.0
    %347 = vmatpush2.msra.mxu0 0.0
    %348 = vmatprep.subr.mxu0 0.0
    %349 = vmatpush2.msra.mxu0 0.0
    %350 = vmatprep.subr.mxu0 0.0
    %351 = vmatpush2.msra.mxu0 0.0
    %352 = vmatprep.subr.mxu0 0.0
    %353 = vmatpush2.msra.mxu0 0.0
    %354 = vmatprep.subr.mxu0 0.0
    %355 = vmatpush2.msra.mxu0 0.0
    %356 = vmatprep.subr.mxu0 0.0
    %357 = vmatpush2.msra.mxu0 0.0
    %358 = vmatprep.subr.mxu0 0.0
    %359 = vmatpush2.msra.mxu0 0.0
    %360 = vmatprep.mubr.f32.mxu0 0.0
    %361 = vmatmul.mubr.f32.gmra.mxu0 %v294
    %v362 = vpop.f32.mrf.mxu0
    %v363 = vadd.f32 0.0, %v362
    %v364 = vpop.f32.mrf.mxu0
    %365 = vdwg.mxu0
    %v367 = vrot.slane %v363, 1
    %v370 = vadd.f32 %v286, %v363
    %v371 = vadd.f32 %v287, %v367
    %v372 = vxor.u32 %v370, 2147483648
    %v373 = vxor.u32 %v371, 2147483648
    %v374 = vmul.f32 %v372, 1.442695
    %v375 = vpow.pop %v374
    %v376 = vmul.f32 %v373, 1.442695
    %v377 = vpow.pop %v376
    %v378 = vadd.f32 %v375, 1.0
    %v379 = vadd.f32 %v377, 1.0
    %v380 = vrcp.pop %v378
    %v381 = vmul.f32 1.0, %v380
    %v382 = vrcp.pop %v379
    %v383 = vmul.f32 1.0, %v382
    %384 = vrot.lane.b32.xlu0 %v284, 96
    %v385 = vpop.permute.xlu0 %384
    %386 = vrot.lane.b32.xlu0 %v285, 96
    %v387 = vpop.permute.xlu0 %386
    %v390 = vmul.f32 %v381, %v385
    %v391 = vmul.f32 %v383, %v387
    %v394 = vrot.slane %v391, 7
    %v395 = vsel %vm174, %v394, %v390
    %396 = vrot.lane.b32.xlu0 %v395, 96
    %v397 = vpop.permute.xlu0 %396
    %v398 = vsel %vm66, %v397, 0
    %400 = vmatprep.subr.mxu0 0.0
    %401 = vmatpush1.msra.mxu0 0.0
    %402 = vmatprep.subr.mxu0 0.0
    %403 = vmatpush1.msra.mxu0 0.0
    %404 = vmatprep.subr.mxu0 0.0
    %405 = vmatpush1.msra.mxu0 0.0
    %406 = vmatprep.subr.mxu0 0.0
    %407 = vmatpush1.msra.mxu0 0.0
    %408 = vmatprep.subr.mxu0 0.0
    %409 = vmatpush1.msra.mxu0 0.0
    %410 = vmatprep.subr.mxu0 0.0
    %411 = vmatpush1.msra.mxu0 0.0
    %412 = vmatprep.subr.mxu0 0.0
    %413 = vmatpush1.msra.mxu0 0.0
    %414 = vmatprep.subr.mxu0 0.0
    %415 = vmatpush1.msra.mxu0 0.0
    %416 = vmatprep.subr.mxu0 0.0
    %417 = vmatpush1.msra.mxu0 0.0
    %418 = vmatprep.subr.mxu0 0.0
    %419 = vmatpush1.msra.mxu0 0.0
    %420 = vmatprep.subr.mxu0 0.0
    %421 = vmatpush1.msra.mxu0 0.0
    %422 = vmatprep.subr.mxu0 0.0
    %423 = vmatpush1.msra.mxu0 0.0
    %424 = vmatprep.subr.mxu0 0.0
    %425 = vmatpush1.msra.mxu0 %v170
    %426 = vmatprep.subr.mxu0 0.0
    %427 = vmatpush1.msra.mxu0 %v169
    %428 = vmatprep.subr.mxu0 0.0
    %429 = vmatpush1.msra.mxu0 %v168
    %430 = vmatprep.subr.mxu0 0.0
    %431 = vmatpush1.msra.mxu0 %v167
    %432 = vmatprep.subr.mxu0 0.0
    %433 = vmatpush2.msra.mxu0 0.0
    %434 = vmatprep.subr.mxu0 0.0
    %435 = vmatpush2.msra.mxu0 0.0
    %436 = vmatprep.subr.mxu0 0.0
    %437 = vmatpush2.msra.mxu0 0.0
    %438 = vmatprep.subr.mxu0 0.0
    %439 = vmatpush2.msra.mxu0 0.0
    %440 = vmatprep.subr.mxu0 0.0
    %441 = vmatpush2.msra.mxu0 0.0
    %442 = vmatprep.subr.mxu0 0.0
    %443 = vmatpush2.msra.mxu0 0.0
    %444 = vmatprep.subr.mxu0 0.0
    %445 = vmatpush2.msra.mxu0 0.0
    %446 = vmatprep.subr.mxu0 0.0
    %447 = vmatpush2.msra.mxu0 0.0
    %448 = vmatprep.subr.mxu0 0.0
    %449 = vmatpush2.msra.mxu0 0.0
    %450 = vmatprep.subr.mxu0 0.0
    %451 = vmatpush2.msra.mxu0 0.0
    %452 = vmatprep.subr.mxu0 0.0
    %453 = vmatpush2.msra.mxu0 0.0
    %454 = vmatprep.subr.mxu0 0.0
    %455 = vmatpush2.msra.mxu0 0.0
    %456 = vmatprep.subr.mxu0 0.0
    %457 = vmatpush2.msra.mxu0 0.0
    %458 = vmatprep.subr.mxu0 0.0
    %459 = vmatpush2.msra.mxu0 0.0
    %460 = vmatprep.subr.mxu0 0.0
    %461 = vmatpush2.msra.mxu0 0.0
    %462 = vmatprep.subr.mxu0 0.0
    %463 = vmatpush2.msra.mxu0 0.0
    %464 = vmatprep.mubr.f32.mxu0 0.0
    %465 = vmatmul.mubr.f32.gmra.mxu0 %v398
    %v466 = vpop.f32.mrf.mxu0
    %v467 = vadd.f32 0.0, %v466
    %v468 = vpop.f32.mrf.mxu0
    %469 = vdwg.mxu0
    %v471 = vrot.slane %v467, 1
    %472 = vrot.lane.b32.xlu0 %v467, 64
    %v473 = vpop.permute.xlu0 %472
    %474 = vrot.lane.b32.xlu0 %v471, 64
    %v475 = vpop.permute.xlu0 %474
    %v478 = vadd.f32 %v286, %v473
    %v479 = vadd.f32 %v287, %v475
    %v480 = vtanh.pop %v478
    %v481 = vtanh.pop %v479
    %v482 = vsub.f32 %v284, %v480
    %v483 = vsub.f32 %v285, %v481
    %486 = vrot.lane.b32.xlu0 %v482, 64
    %v487 = vpop.permute.xlu0 %486
    %488 = vrot.lane.b32.xlu0 %v483, 64
    %v489 = vpop.permute.xlu0 %488
    %v492 = vmul.f32 %v381, %v487
    %v493 = vmul.f32 %v383, %v489
    %496 = vrot.lane.b32.xlu0 %v492, 64
    %v497 = vpop.permute.xlu0 %496
    %498 = vrot.lane.b32.xlu0 %v493, 64
    %v499 = vpop.permute.xlu0 %498
    %v502 = vadd.f32 %v480, %v497
    %v503 = vadd.f32 %v481, %v499
    %v504 = vld [vmem:[#allocation6 + $0x2] sm:$0x1]
    %v505 = vld [vmem:[#allocation6 + $0xa] sm:$0x1]
    %v508 = vrot.slane %v503, 7
    %v509 = vsel %vm174, %v508, %v502
    %510 = vrot.lane.b32.xlu0 %v509, 64
    %v511 = vpop.permute.xlu0 %510
    %v512 = vsel %vm66, %v511, 0
    %514 = vmatprep.subr.mxu0 0.0
    %515 = vmatpush1.msra.mxu0 0.0
    %516 = vmatprep.subr.mxu0 0.0
    %517 = vmatpush1.msra.mxu0 0.0
    %518 = vmatprep.subr.mxu0 0.0
    %519 = vmatpush1.msra.mxu0 0.0
    %520 = vmatprep.subr.mxu0 0.0
    %521 = vmatpush1.msra.mxu0 0.0
    %522 = vmatprep.subr.mxu0 0.0
    %523 = vmatpush1.msra.mxu0 0.0
    %524 = vmatprep.subr.mxu0 0.0
    %525 = vmatpush1.msra.mxu0 0.0
    %526 = vmatprep.subr.mxu0 0.0
    %527 = vmatpush1.msra.mxu0 0.0
    %528 = vmatprep.subr.mxu0 0.0
    %529 = vmatpush1.msra.mxu0 0.0
    %530 = vmatprep.subr.mxu0 0.0
    %531 = vmatpush1.msra.mxu0 0.0
    %532 = vmatprep.subr.mxu0 0.0
    %533 = vmatpush1.msra.mxu0 0.0
    %534 = vmatprep.subr.mxu0 0.0
    %535 = vmatpush1.msra.mxu0 0.0
    %536 = vmatprep.subr.mxu0 0.0
    %537 = vmatpush1.msra.mxu0 0.0
    %538 = vmatprep.subr.mxu0 0.0
    %539 = vmatpush1.msra.mxu0 %v65
    %540 = vmatprep.subr.mxu0 0.0
    %541 = vmatpush1.msra.mxu0 %v64
    %542 = vmatprep.subr.mxu0 0.0
    %543 = vmatpush1.msra.mxu0 %v63
    %544 = vmatprep.subr.mxu0 0.0
    %545 = vmatpush1.msra.mxu0 %v62
    %546 = vmatprep.subr.mxu0 0.0
    %547 = vmatpush2.msra.mxu0 0.0
    %548 = vmatprep.subr.mxu0 0.0
    %549 = vmatpush2.msra.mxu0 0.0
    %550 = vmatprep.subr.mxu0 0.0
    %551 = vmatpush2.msra.mxu0 0.0
    %552 = vmatprep.subr.mxu0 0.0
    %553 = vmatpush2.msra.mxu0 0.0
    %554 = vmatprep.subr.mxu0 0.0
    %555 = vmatpush2.msra.mxu0 0.0
    %556 = vmatprep.subr.mxu0 0.0
    %557 = vmatpush2.msra.mxu0 0.0
    %558 = vmatprep.subr.mxu0 0.0
    %559 = vmatpush2.msra.mxu0 0.0
    %560 = vmatprep.subr.mxu0 0.0
    %561 = vmatpush2.msra.mxu0 0.0
    %562 = vmatprep.subr.mxu0 0.0
    %563 = vmatpush2.msra.mxu0 0.0
    %564 = vmatprep.subr.mxu0 0.0
    %565 = vmatpush2.msra.mxu0 0.0
    %566 = vmatprep.subr.mxu0 0.0
    %567 = vmatpush2.msra.mxu0 0.0
    %568 = vmatprep.subr.mxu0 0.0
    %569 = vmatpush2.msra.mxu0 0.0
    %570 = vmatprep.subr.mxu0 0.0
    %571 = vmatpush2.msra.mxu0 0.0
    %572 = vmatprep.subr.mxu0 0.0
    %573 = vmatpush2.msra.mxu0 0.0
    %574 = vmatprep.subr.mxu0 0.0
    %575 = vmatpush2.msra.mxu0 0.0
    %576 = vmatprep.subr.mxu0 0.0
    %577 = vmatpush2.msra.mxu0 0.0
    %578 = vmatprep.mubr.f32.mxu0 0.0
    %579 = vmatmul.mubr.f32.gmra.mxu0 %v512
    %v580 = vpop.f32.mrf.mxu0
    %v581 = vadd.f32 0.0, %v580
    %v582 = vpop.f32.mrf.mxu0
    %583 = vdwg.mxu0
    %v585 = vrot.slane %v581, 1
    %v588 = vadd.f32 %v504, %v581
    %v589 = vadd.f32 %v505, %v585
    %v590 = vxor.u32 %v588, 2147483648
    %v591 = vxor.u32 %v589, 2147483648
    %v592 = vmul.f32 %v590, 1.442695
    %v593 = vpow.pop %v592
    %v594 = vmul.f32 %v591, 1.442695
    %v595 = vpow.pop %v594
    %v596 = vadd.f32 %v593, 1.0
    %v597 = vadd.f32 %v595, 1.0
    %v598 = vrcp.pop %v596
    %v599 = vmul.f32 1.0, %v598
    %v600 = vrcp.pop %v597
    %v601 = vmul.f32 1.0, %v600
    %602 = vrot.lane.b32.xlu0 %v502, 96
    %v603 = vpop.permute.xlu0 %602
    %604 = vrot.lane.b32.xlu0 %v503, 96
    %v605 = vpop.permute.xlu0 %604
    %v608 = vmul.f32 %v599, %v603
    %v609 = vmul.f32 %v601, %v605
    %v612 = vrot.slane %v609, 7
    %v613 = vsel %vm174, %v612, %v608
    %614 = vrot.lane.b32.xlu0 %v613, 96
    %v615 = vpop.permute.xlu0 %614
    %v616 = vsel %vm66, %v615, 0
    %618 = vmatprep.subr.mxu0 0.0
    %619 = vmatpush1.msra.mxu0 0.0
    %620 = vmatprep.subr.mxu0 0.0
    %621 = vmatpush1.msra.mxu0 0.0
    %622 = vmatprep.subr.mxu0 0.0
    %623 = vmatpush1.msra.mxu0 0.0
    %624 = vmatprep.subr.mxu0 0.0
    %625 = vmatpush1.msra.mxu0 0.0
    %626 = vmatprep.subr.mxu0 0.0
    %627 = vmatpush1.msra.mxu0 0.0
    %628 = vmatprep.subr.mxu0 0.0
    %629 = vmatpush1.msra.mxu0 0.0
    %630 = vmatprep.subr.mxu0 0.0
    %631 = vmatpush1.msra.mxu0 0.0
    %632 = vmatprep.subr.mxu0 0.0
    %633 = vmatpush1.msra.mxu0 0.0
    %634 = vmatprep.subr.mxu0 0.0
    %635 = vmatpush1.msra.mxu0 0.0
    %636 = vmatprep.subr.mxu0 0.0
    %637 = vmatpush1.msra.mxu0 0.0
    %638 = vmatprep.subr.mxu0 0.0
    %639 = vmatpush1.msra.mxu0 0.0
    %640 = vmatprep.subr.mxu0 0.0
    %641 = vmatpush1.msra.mxu0 0.0
    %642 = vmatprep.subr.mxu0 0.0
    %643 = vmatpush1.msra.mxu0 %v170
    %644 = vmatprep.subr.mxu0 0.0
    %645 = vmatpush1.msra.mxu0 %v169
    %646 = vmatprep.subr.mxu0 0.0
    %647 = vmatpush1.msra.mxu0 %v168
    %648 = vmatprep.subr.mxu0 0.0
    %649 = vmatpush1.msra.mxu0 %v167
    %650 = vmatprep.subr.mxu0 0.0
    %651 = vmatpush2.msra.mxu0 0.0
    %652 = vmatprep.subr.mxu0 0.0
    %653 = vmatpush2.msra.mxu0 0.0
    %654 = vmatprep.subr.mxu0 0.0
    %655 = vmatpush2.msra.mxu0 0.0
    %656 = vmatprep.subr.mxu0 0.0
    %657 = vmatpush2.msra.mxu0 0.0
    %658 = vmatprep.subr.mxu0 0.0
    %659 = vmatpush2.msra.mxu0 0.0
    %660 = vmatprep.subr.mxu0 0.0
    %661 = vmatpush2.msra.mxu0 0.0
    %662 = vmatprep.subr.mxu0 0.0
    %663 = vmatpush2.msra.mxu0 0.0
    %664 = vmatprep.subr.mxu0 0.0
    %665 = vmatpush2.msra.mxu0 0.0
    %666 = vmatprep.subr.mxu0 0.0
    %667 = vmatpush2.msra.mxu0 0.0
    %668 = vmatprep.subr.mxu0 0.0
    %669 = vmatpush2.msra.mxu0 0.0
    %670 = vmatprep.subr.mxu0 0.0
    %671 = vmatpush2.msra.mxu0 0.0
    %672 = vmatprep.subr.mxu0 0.0
    %673 = vmatpush2.msra.mxu0 0.0
    %674 = vmatprep.subr.mxu0 0.0
    %675 = vmatpush2.msra.mxu0 0.0
    %676 = vmatprep.subr.mxu0 0.0
    %677 = vmatpush2.msra.mxu0 0.0
    %678 = vmatprep.subr.mxu0 0.0
    %679 = vmatpush2.msra.mxu0 0.0
    %680 = vmatprep.subr.mxu0 0.0
    %681 = vmatpush2.msra.mxu0 0.0
    %682 = vmatprep.mubr.f32.mxu0 0.0
    %683 = vmatmul.mubr.f32.gmra.mxu0 %v616
    %v684 = vpop.f32.mrf.mxu0
    %v685 = vadd.f32 0.0, %v684
    %v686 = vpop.f32.mrf.mxu0
    %687 = vdwg.mxu0
    %v689 = vrot.slane %v685, 1
    %690 = vrot.lane.b32.xlu0 %v685, 64
    %v691 = vpop.permute.xlu0 %690
    %692 = vrot.lane.b32.xlu0 %v689, 64
    %v693 = vpop.permute.xlu0 %692
    %v696 = vadd.f32 %v504, %v691
    %v697 = vadd.f32 %v505, %v693
    %v698 = vtanh.pop %v696
    %v699 = vtanh.pop %v697
    %v700 = vsub.f32 %v502, %v698
    %v701 = vsub.f32 %v503, %v699
    %704 = vrot.lane.b32.xlu0 %v700, 64
    %v705 = vpop.permute.xlu0 %704
    %706 = vrot.lane.b32.xlu0 %v701, 64
    %v707 = vpop.permute.xlu0 %706
    %v710 = vmul.f32 %v599, %v705
    %v711 = vmul.f32 %v601, %v707
    %714 = vrot.lane.b32.xlu0 %v710, 64
    %v715 = vpop.permute.xlu0 %714
    %716 = vrot.lane.b32.xlu0 %v711, 64
    %v717 = vpop.permute.xlu0 %716
    %v720 = vadd.f32 %v698, %v715
    %v721 = vadd.f32 %v699, %v717
    %v722 = vld [vmem:[#allocation6 + $0x3] sm:$0x1]
    %v723 = vld [vmem:[#allocation6 + $0xb] sm:$0x1]
    %v726 = vrot.slane %v721, 7
    %v727 = vsel %vm174, %v726, %v720
    %728 = vrot.lane.b32.xlu0 %v727, 64
    %v729 = vpop.permute.xlu0 %728
    %v730 = vsel %vm66, %v729, 0
    %732 = vmatprep.subr.mxu0 0.0
    %733 = vmatpush1.msra.mxu0 0.0
    %734 = vmatprep.subr.mxu0 0.0
    %735 = vmatpush1.msra.mxu0 0.0
    %736 = vmatprep.subr.mxu0 0.0
    %737 = vmatpush1.msra.mxu0 0.0
    %738 = vmatprep.subr.mxu0 0.0
    %739 = vmatpush1.msra.mxu0 0.0
    %740 = vmatprep.subr.mxu0 0.0
    %741 = vmatpush1.msra.mxu0 0.0
    %742 = vmatprep.subr.mxu0 0.0
    %743 = vmatpush1.msra.mxu0 0.0
    %744 = vmatprep.subr.mxu0 0.0
    %745 = vmatpush1.msra.mxu0 0.0
    %746 = vmatprep.subr.mxu0 0.0
    %747 = vmatpush1.msra.mxu0 0.0
    %748 = vmatprep.subr.mxu0 0.0
    %749 = vmatpush1.msra.mxu0 0.0
    %750 = vmatprep.subr.mxu0 0.0
    %751 = vmatpush1.msra.mxu0 0.0
    %752 = vmatprep.subr.mxu0 0.0
    %753 = vmatpush1.msra.mxu0 0.0
    %754 = vmatprep.subr.mxu0 0.0
    %755 = vmatpush1.msra.mxu0 0.0
    %756 = vmatprep.subr.mxu0 0.0
    %757 = vmatpush1.msra.mxu0 %v65
    %758 = vmatprep.subr.mxu0 0.0
    %759 = vmatpush1.msra.mxu0 %v64
    %760 = vmatprep.subr.mxu0 0.0
    %761 = vmatpush1.msra.mxu0 %v63
    %762 = vmatprep.subr.mxu0 0.0
    %763 = vmatpush1.msra.mxu0 %v62
    %764 = vmatprep.subr.mxu0 0.0
    %765 = vmatpush2.msra.mxu0 0.0
    %766 = vmatprep.subr.mxu0 0.0
    %767 = vmatpush2.msra.mxu0 0.0
    %768 = vmatprep.subr.mxu0 0.0
    %769 = vmatpush2.msra.mxu0 0.0
    %770 = vmatprep.subr.mxu0 0.0
    %771 = vmatpush2.msra.mxu0 0.0
    %772 = vmatprep.subr.mxu0 0.0
    %773 = vmatpush2.msra.mxu0 0.0
    %774 = vmatprep.subr.mxu0 0.0
    %775 = vmatpush2.msra.mxu0 0.0
    %776 = vmatprep.subr.mxu0 0.0
    %777 = vmatpush2.msra.mxu0 0.0
    %778 = vmatprep.subr.mxu0 0.0
    %779 = vmatpush2.msra.mxu0 0.0
    %780 = vmatprep.subr.mxu0 0.0
    %781 = vmatpush2.msra.mxu0 0.0
    %782 = vmatprep.subr.mxu0 0.0
    %783 = vmatpush2.msra.mxu0 0.0
    %784 = vmatprep.subr.mxu0 0.0
    %785 = vmatpush2.msra.mxu0 0.0
    %786 = vmatprep.subr.mxu0 0.0
    %787 = vmatpush2.msra.mxu0 0.0
    %788 = vmatprep.subr.mxu0 0.0
    %789 = vmatpush2.msra.mxu0 0.0
    %790 = vmatprep.subr.mxu0 0.0
    %791 = vmatpush2.msra.mxu0 0.0
    %792 = vmatprep.subr.mxu0 0.0
    %793 = vmatpush2.msra.mxu0 0.0
    %794 = vmatprep.subr.mxu0 0.0
    %795 = vmatpush2.msra.mxu0 0.0
    %796 = vmatprep.mubr.f32.mxu0 0.0
    %797 = vmatmul.mubr.f32.gmra.mxu0 %v730
    %v798 = vpop.f32.mrf.mxu0
    %v799 = vadd.f32 0.0, %v798
    %v800 = vpop.f32.mrf.mxu0
    %801 = vdwg.mxu0
    %v803 = vrot.slane %v799, 1
    %v806 = vadd.f32 %v722, %v799
    %v807 = vadd.f32 %v723, %v803
    %v808 = vxor.u32 %v806, 2147483648
    %v809 = vxor.u32 %v807, 2147483648
    %v810 = vmul.f32 %v808, 1.442695
    %v811 = vpow.pop %v810
    %v812 = vmul.f32 %v809, 1.442695
    %v813 = vpow.pop %v812
    %v814 = vadd.f32 %v811, 1.0
    %v815 = vadd.f32 %v813, 1.0
    %v816 = vrcp.pop %v814
    %v817 = vmul.f32 1.0, %v816
    %v818 = vrcp.pop %v815
    %v819 = vmul.f32 1.0, %v818
    %820 = vrot.lane.b32.xlu0 %v720, 96
    %v821 = vpop.permute.xlu0 %820
    %822 = vrot.lane.b32.xlu0 %v721, 96
    %v823 = vpop.permute.xlu0 %822
    %v826 = vmul.f32 %v817, %v821
    %v827 = vmul.f32 %v819, %v823
    %v830 = vrot.slane %v827, 7
    %v831 = vsel %vm174, %v830, %v826
    %832 = vrot.lane.b32.xlu0 %v831, 96
    %v833 = vpop.permute.xlu0 %832
    %v834 = vsel %vm66, %v833, 0
    %836 = vmatprep.subr.mxu0 0.0
    %837 = vmatpush1.msra.mxu0 0.0
    %838 = vmatprep.subr.mxu0 0.0
    %839 = vmatpush1.msra.mxu0 0.0
    %840 = vmatprep.subr.mxu0 0.0
    %841 = vmatpush1.msra.mxu0 0.0
    %842 = vmatprep.subr.mxu0 0.0
    %843 = vmatpush1.msra.mxu0 0.0
    %844 = vmatprep.subr.mxu0 0.0
    %845 = vmatpush1.msra.mxu0 0.0
    %846 = vmatprep.subr.mxu0 0.0
    %847 = vmatpush1.msra.mxu0 0.0
    %848 = vmatprep.subr.mxu0 0.0
    %849 = vmatpush1.msra.mxu0 0.0
    %850 = vmatprep.subr.mxu0 0.0
    %851 = vmatpush1.msra.mxu0 0.0
    %852 = vmatprep.subr.mxu0 0.0
    %853 = vmatpush1.msra.mxu0 0.0
    %854 = vmatprep.subr.mxu0 0.0
    %855 = vmatpush1.msra.mxu0 0.0
    %856 = vmatprep.subr.mxu0 0.0
    %857 = vmatpush1.msra.mxu0 0.0
    %858 = vmatprep.subr.mxu0 0.0
    %859 = vmatpush1.msra.mxu0 0.0
    %860 = vmatprep.subr.mxu0 0.0
    %861 = vmatpush1.msra.mxu0 %v170
    %862 = vmatprep.subr.mxu0 0.0
    %863 = vmatpush1.msra.mxu0 %v169
    %864 = vmatprep.subr.mxu0 0.0
    %865 = vmatpush1.msra.mxu0 %v168
    %866 = vmatprep.subr.mxu0 0.0
    %867 = vmatpush1.msra.mxu0 %v167
    %868 = vmatprep.subr.mxu0 0.0
    %869 = vmatpush2.msra.mxu0 0.0
    %870 = vmatprep.subr.mxu0 0.0
    %871 = vmatpush2.msra.mxu0 0.0
    %872 = vmatprep.subr.mxu0 0.0
    %873 = vmatpush2.msra.mxu0 0.0
    %874 = vmatprep.subr.mxu0 0.0
    %875 = vmatpush2.msra.mxu0 0.0
    %876 = vmatprep.subr.mxu0 0.0
    %877 = vmatpush2.msra.mxu0 0.0
    %878 = vmatprep.subr.mxu0 0.0
    %879 = vmatpush2.msra.mxu0 0.0
    %880 = vmatprep.subr.mxu0 0.0
    %881 = vmatpush2.msra.mxu0 0.0
    %882 = vmatprep.subr.mxu0 0.0
    %883 = vmatpush2.msra.mxu0 0.0
    %884 = vmatprep.subr.mxu0 0.0
    %885 = vmatpush2.msra.mxu0 0.0
    %886 = vmatprep.subr.mxu0 0.0
    %887 = vmatpush2.msra.mxu0 0.0
    %888 = vmatprep.subr.mxu0 0.0
    %889 = vmatpush2.msra.mxu0 0.0
    %890 = vmatprep.subr.mxu0 0.0
    %891 = vmatpush2.msra.mxu0 0.0
    %892 = vmatprep.subr.mxu0 0.0
    %893 = vmatpush2.msra.mxu0 0.0
    %894 = vmatprep.subr.mxu0 0.0
    %895 = vmatpush2.msra.mxu0 0.0
    %896 = vmatprep.subr.mxu0 0.0
    %897 = vmatpush2.msra.mxu0 0.0
    %898 = vmatprep.subr.mxu0 0.0
    %899 = vmatpush2.msra.mxu0 0.0
    %900 = vmatprep.mubr.f32.mxu0 0.0
    %901 = vmatmul.mubr.f32.gmra.mxu0 %v834
    %v902 = vpop.f32.mrf.mxu0
    %v903 = vadd.f32 0.0, %v902
    %v904 = vpop.f32.mrf.mxu0
    %905 = vdwg.mxu0
    %v907 = vrot.slane %v903, 1
    %908 = vrot.lane.b32.xlu0 %v903, 64
    %v909 = vpop.permute.xlu0 %908
    %910 = vrot.lane.b32.xlu0 %v907, 64
    %v911 = vpop.permute.xlu0 %910
    %v914 = vadd.f32 %v722, %v909
    %v915 = vadd.f32 %v723, %v911
    %v916 = vtanh.pop %v914
    %v917 = vtanh.pop %v915
    %v918 = vsub.f32 %v720, %v916
    %v919 = vsub.f32 %v721, %v917
    %922 = vrot.lane.b32.xlu0 %v918, 64
    %v923 = vpop.permute.xlu0 %922
    %924 = vrot.lane.b32.xlu0 %v919, 64
    %v925 = vpop.permute.xlu0 %924
    %v928 = vmul.f32 %v817, %v923
    %v929 = vmul.f32 %v819, %v925
    %932 = vrot.lane.b32.xlu0 %v928, 64
    %v933 = vpop.permute.xlu0 %932
    %934 = vrot.lane.b32.xlu0 %v929, 64
    %v935 = vpop.permute.xlu0 %934
    %v938 = vadd.f32 %v916, %v933
    %v939 = vadd.f32 %v917, %v935
    %v940 = vld [vmem:[#allocation6 + $0x4] sm:$0x1]
    %v941 = vld [vmem:[#allocation6 + $0xc] sm:$0x1]
    %v944 = vrot.slane %v939, 7
    %v945 = vsel %vm174, %v944, %v938
    %946 = vrot.lane.b32.xlu0 %v945, 64
    %v947 = vpop.permute.xlu0 %946
    %v948 = vsel %vm66, %v947, 0
    %950 = vmatprep.subr.mxu0 0.0
    %951 = vmatpush1.msra.mxu0 0.0
    %952 = vmatprep.subr.mxu0 0.0
    %953 = vmatpush1.msra.mxu0 0.0
    %954 = vmatprep.subr.mxu0 0.0
    %955 = vmatpush1.msra.mxu0 0.0
    %956 = vmatprep.subr.mxu0 0.0
    %957 = vmatpush1.msra.mxu0 0.0
    %958 = vmatprep.subr.mxu0 0.0
    %959 = vmatpush1.msra.mxu0 0.0
    %960 = vmatprep.subr.mxu0 0.0
    %961 = vmatpush1.msra.mxu0 0.0
    %962 = vmatprep.subr.mxu0 0.0
    %963 = vmatpush1.msra.mxu0 0.0
    %964 = vmatprep.subr.mxu0 0.0
    %965 = vmatpush1.msra.mxu0 0.0
    %966 = vmatprep.subr.mxu0 0.0
    %967 = vmatpush1.msra.mxu0 0.0
    %968 = vmatprep.subr.mxu0 0.0
    %969 = vmatpush1.msra.mxu0 0.0
    %970 = vmatprep.subr.mxu0 0.0
    %971 = vmatpush1.msra.mxu0 0.0
    %972 = vmatprep.subr.mxu0 0.0
    %973 = vmatpush1.msra.mxu0 0.0
    %974 = vmatprep.subr.mxu0 0.0
    %975 = vmatpush1.msra.mxu0 %v65
    %976 = vmatprep.subr.mxu0 0.0
    %977 = vmatpush1.msra.mxu0 %v64
    %978 = vmatprep.subr.mxu0 0.0
    %979 = vmatpush1.msra.mxu0 %v63
    %980 = vmatprep.subr.mxu0 0.0
    %981 = vmatpush1.msra.mxu0 %v62
    %982 = vmatprep.subr.mxu0 0.0
    %983 = vmatpush2.msra.mxu0 0.0
    %984 = vmatprep.subr.mxu0 0.0
    %985 = vmatpush2.msra.mxu0 0.0
    %986 = vmatprep.subr.mxu0 0.0
    %987 = vmatpush2.msra.mxu0 0.0
    %988 = vmatprep.subr.mxu0 0.0
    %989 = vmatpush2.msra.mxu0 0.0
    %990 = vmatprep.subr.mxu0 0.0
    %991 = vmatpush2.msra.mxu0 0.0
    %992 = vmatprep.subr.mxu0 0.0
    %993 = vmatpush2.msra.mxu0 0.0
    %994 = vmatprep.subr.mxu0 0.0
    %995 = vmatpush2.msra.mxu0 0.0
    %996 = vmatprep.subr.mxu0 0.0
    %997 = vmatpush2.msra.mxu0 0.0
    %998 = vmatprep.subr.mxu0 0.0
    %999 = vmatpush2.msra.mxu0 0.0
    %1000 = vmatprep.subr.mxu0 0.0
    %1001 = vmatpush2.msra.mxu0 0.0
    %1002 = vmatprep.subr.mxu0 0.0
    %1003 = vmatpush2.msra.mxu0 0.0
    %1004 = vmatprep.subr.mxu0 0.0
    %1005 = vmatpush2.msra.mxu0 0.0
    %1006 = vmatprep.subr.mxu0 0.0
    %1007 = vmatpush2.msra.mxu0 0.0
    %1008 = vmatprep.subr.mxu0 0.0
    %1009 = vmatpush2.msra.mxu0 0.0
    %1010 = vmatprep.subr.mxu0 0.0
    %1011 = vmatpush2.msra.mxu0 0.0
    %1012 = vmatprep.subr.mxu0 0.0
    %1013 = vmatpush2.msra.mxu0 0.0
    %1014 = vmatprep.mubr.f32.mxu0 0.0
    %1015 = vmatmul.mubr.f32.gmra.mxu0 %v948
    %v1016 = vpop.f32.mrf.mxu0
    %v1017 = vadd.f32 0.0, %v1016
    %v1018 = vpop.f32.mrf.mxu0
    %1019 = vdwg.mxu0
    %v1021 = vrot.slane %v1017, 1
    %v1024 = vadd.f32 %v940, %v1017
    %v1025 = vadd.f32 %v941, %v1021
    %v1026 = vxor.u32 %v1024, 2147483648
    %v1027 = vxor.u32 %v1025, 2147483648
    %v1028 = vmul.f32 %v1026, 1.442695
    %v1029 = vpow.pop %v1028
    %v1030 = vmul.f32 %v1027, 1.442695
    %v1031 = vpow.pop %v1030
    %v1032 = vadd.f32 %v1029, 1.0
    %v1033 = vadd.f32 %v1031, 1.0
    %v1034 = vrcp.pop %v1032
    %v1035 = vmul.f32 1.0, %v1034
    %v1036 = vrcp.pop %v1033
    %v1037 = vmul.f32 1.0, %v1036
    %1038 = vrot.lane.b32.xlu0 %v938, 96
    %v1039 = vpop.permute.xlu0 %1038
    %1040 = vrot.lane.b32.xlu0 %v939, 96
    %v1041 = vpop.permute.xlu0 %1040
    %v1044 = vmul.f32 %v1035, %v1039
    %v1045 = vmul.f32 %v1037, %v1041
    %v1048 = vrot.slane %v1045, 7
    %v1049 = vsel %vm174, %v1048, %v1044
    %1050 = vrot.lane.b32.xlu0 %v1049, 96
    %v1051 = vpop.permute.xlu0 %1050
    %v1052 = vsel %vm66, %v1051, 0
    %1054 = vmatprep.subr.mxu0 0.0
    %1055 = vmatpush1.msra.mxu0 0.0
    %1056 = vmatprep.subr.mxu0 0.0
    %1057 = vmatpush1.msra.mxu0 0.0
    %1058 = vmatprep.subr.mxu0 0.0
    %1059 = vmatpush1.msra.mxu0 0.0
    %1060 = vmatprep.subr.mxu0 0.0
    %1061 = vmatpush1.msra.mxu0 0.0
    %1062 = vmatprep.subr.mxu0 0.0
    %1063 = vmatpush1.msra.mxu0 0.0
    %1064 = vmatprep.subr.mxu0 0.0
    %1065 = vmatpush1.msra.mxu0 0.0
    %1066 = vmatprep.subr.mxu0 0.0
    %1067 = vmatpush1.msra.mxu0 0.0
    %1068 = vmatprep.subr.mxu0 0.0
    %1069 = vmatpush1.msra.mxu0 0.0
    %1070 = vmatprep.subr.mxu0 0.0
    %1071 = vmatpush1.msra.mxu0 0.0
    %1072 = vmatprep.subr.mxu0 0.0
    %1073 = vmatpush1.msra.mxu0 0.0
    %1074 = vmatprep.subr.mxu0 0.0
    %1075 = vmatpush1.msra.mxu0 0.0
    %1076 = vmatprep.subr.mxu0 0.0
    %1077 = vmatpush1.msra.mxu0 0.0
    %1078 = vmatprep.subr.mxu0 0.0
    %1079 = vmatpush1.msra.mxu0 %v170
    %1080 = vmatprep.subr.mxu0 0.0
    %1081 = vmatpush1.msra.mxu0 %v169
    %1082 = vmatprep.subr.mxu0 0.0
    %1083 = vmatpush1.msra.mxu0 %v168
    %1084 = vmatprep.subr.mxu0 0.0
    %1085 = vmatpush1.msra.mxu0 %v167
    %1086 = vmatprep.subr.mxu0 0.0
    %1087 = vmatpush2.msra.mxu0 0.0
    %1088 = vmatprep.subr.mxu0 0.0
    %1089 = vmatpush2.msra.mxu0 0.0
    %1090 = vmatprep.subr.mxu0 0.0
    %1091 = vmatpush2.msra.mxu0 0.0
    %1092 = vmatprep.subr.mxu0 0.0
    %1093 = vmatpush2.msra.mxu0 0.0
    %1094 = vmatprep.subr.mxu0 0.0
    %1095 = vmatpush2.msra.mxu0 0.0
    %1096 = vmatprep.subr.mxu0 0.0
    %1097 = vmatpush2.msra.mxu0 0.0
    %1098 = vmatprep.subr.mxu0 0.0
    %1099 = vmatpush2.msra.mxu0 0.0
    %1100 = vmatprep.subr.mxu0 0.0
    %1101 = vmatpush2.msra.mxu0 0.0
    %1102 = vmatprep.subr.mxu0 0.0
    %1103 = vmatpush2.msra.mxu0 0.0
    %1104 = vmatprep.subr.mxu0 0.0
    %1105 = vmatpush2.msra.mxu0 0.0
    %1106 = vmatprep.subr.mxu0 0.0
    %1107 = vmatpush2.msra.mxu0 0.0
    %1108 = vmatprep.subr.mxu0 0.0
    %1109 = vmatpush2.msra.mxu0 0.0
    %1110 = vmatprep.subr.mxu0 0.0
    %1111 = vmatpush2.msra.mxu0 0.0
    %1112 = vmatprep.subr.mxu0 0.0
    %1113 = vmatpush2.msra.mxu0 0.0
    %1114 = vmatprep.subr.mxu0 0.0
    %1115 = vmatpush2.msra.mxu0 0.0
    %1116 = vmatprep.subr.mxu0 0.0
    %1117 = vmatpush2.msra.mxu0 0.0
    %1118 = vmatprep.mubr.f32.mxu0 0.0
    %1119 = vmatmul.mubr.f32.gmra.mxu0 %v1052
    %v1120 = vpop.f32.mrf.mxu0
    %v1121 = vadd.f32 0.0, %v1120
    %v1122 = vpop.f32.mrf.mxu0
    %1123 = vdwg.mxu0
    %v1125 = vrot.slane %v1121, 1
    %1126 = vrot.lane.b32.xlu0 %v1121, 64
    %v1127 = vpop.permute.xlu0 %1126
    %1128 = vrot.lane.b32.xlu0 %v1125, 64
    %v1129 = vpop.permute.xlu0 %1128
    %v1132 = vadd.f32 %v940, %v1127
    %v1133 = vadd.f32 %v941, %v1129
    %v1134 = vtanh.pop %v1132
    %v1135 = vtanh.pop %v1133
    %v1136 = vsub.f32 %v938, %v1134
    %v1137 = vsub.f32 %v939, %v1135
    %1140 = vrot.lane.b32.xlu0 %v1136, 64
    %v1141 = vpop.permute.xlu0 %1140
    %1142 = vrot.lane.b32.xlu0 %v1137, 64
    %v1143 = vpop.permute.xlu0 %1142
    %v1146 = vmul.f32 %v1035, %v1141
    %v1147 = vmul.f32 %v1037, %v1143
    %1150 = vrot.lane.b32.xlu0 %v1146, 64
    %v1151 = vpop.permute.xlu0 %1150
    %1152 = vrot.lane.b32.xlu0 %v1147, 64
    %v1153 = vpop.permute.xlu0 %1152
    %v1156 = vadd.f32 %v1134, %v1151
    %v1157 = vadd.f32 %v1135, %v1153
    %v1158 = vld [vmem:[#allocation6 + $0x5] sm:$0x1]
    %v1159 = vld [vmem:[#allocation6 + $0xd] sm:$0x1]
    %v1162 = vrot.slane %v1157, 7
    %v1163 = vsel %vm174, %v1162, %v1156
    %1164 = vrot.lane.b32.xlu0 %v1163, 64
    %v1165 = vpop.permute.xlu0 %1164
    %v1166 = vsel %vm66, %v1165, 0
    %1168 = vmatprep.subr.mxu0 0.0
    %1169 = vmatpush1.msra.mxu0 0.0
    %1170 = vmatprep.subr.mxu0 0.0
    %1171 = vmatpush1.msra.mxu0 0.0
    %1172 = vmatprep.subr.mxu0 0.0
    %1173 = vmatpush1.msra.mxu0 0.0
    %1174 = vmatprep.subr.mxu0 0.0
    %1175 = vmatpush1.msra.mxu0 0.0
    %1176 = vmatprep.subr.mxu0 0.0
    %1177 = vmatpush1.msra.mxu0 0.0
    %1178 = vmatprep.subr.mxu0 0.0
    %1179 = vmatpush1.msra.mxu0 0.0
    %1180 = vmatprep.subr.mxu0 0.0
    %1181 = vmatpush1.msra.mxu0 0.0
    %1182 = vmatprep.subr.mxu0 0.0
    %1183 = vmatpush1.msra.mxu0 0.0
    %1184 = vmatprep.subr.mxu0 0.0
    %1185 = vmatpush1.msra.mxu0 0.0
    %1186 = vmatprep.subr.mxu0 0.0
    %1187 = vmatpush1.msra.mxu0 0.0
    %1188 = vmatprep.subr.mxu0 0.0
    %1189 = vmatpush1.msra.mxu0 0.0
    %1190 = vmatprep.subr.mxu0 0.0
    %1191 = vmatpush1.msra.mxu0 0.0
    %1192 = vmatprep.subr.mxu0 0.0
    %1193 = vmatpush1.msra.mxu0 %v65
    %1194 = vmatprep.subr.mxu0 0.0
    %1195 = vmatpush1.msra.mxu0 %v64
    %1196 = vmatprep.subr.mxu0 0.0
    %1197 = vmatpush1.msra.mxu0 %v63
    %1198 = vmatprep.subr.mxu0 0.0
    %1199 = vmatpush1.msra.mxu0 %v62
    %1200 = vmatprep.subr.mxu0 0.0
    %1201 = vmatpush2.msra.mxu0 0.0
    %1202 = vmatprep.subr.mxu0 0.0
    %1203 = vmatpush2.msra.mxu0 0.0
    %1204 = vmatprep.subr.mxu0 0.0
    %1205 = vmatpush2.msra.mxu0 0.0
    %1206 = vmatprep.subr.mxu0 0.0
    %1207 = vmatpush2.msra.mxu0 0.0
    %1208 = vmatprep.subr.mxu0 0.0
    %1209 = vmatpush2.msra.mxu0 0.0
    %1210 = vmatprep.subr.mxu0 0.0
    %1211 = vmatpush2.msra.mxu0 0.0
    %1212 = vmatprep.subr.mxu0 0.0
    %1213 = vmatpush2.msra.mxu0 0.0
    %1214 = vmatprep.subr.mxu0 0.0
    %1215 = vmatpush2.msra.mxu0 0.0
    %1216 = vmatprep.subr.mxu0 0.0
    %1217 = vmatpush2.msra.mxu0 0.0
    %1218 = vmatprep.subr.mxu0 0.0
    %1219 = vmatpush2.msra.mxu0 0.0
    %1220 = vmatprep.subr.mxu0 0.0
    %1221 = vmatpush2.msra.mxu0 0.0
    %1222 = vmatprep.subr.mxu0 0.0
    %1223 = vmatpush2.msra.mxu0 0.0
    %1224 = vmatprep.subr.mxu0 0.0
    %1225 = vmatpush2.msra.mxu0 0.0
    %1226 = vmatprep.subr.mxu0 0.0
    %1227 = vmatpush2.msra.mxu0 0.0
    %1228 = vmatprep.subr.mxu0 0.0
    %1229 = vmatpush2.msra.mxu0 0.0
    %1230 = vmatprep.subr.mxu0 0.0
    %1231 = vmatpush2.msra.mxu0 0.0
    %1232 = vmatprep.mubr.f32.mxu0 0.0
    %1233 = vmatmul.mubr.f32.gmra.mxu0 %v1166
    %v1234 = vpop.f32.mrf.mxu0
    %v1235 = vadd.f32 0.0, %v1234
    %v1236 = vpop.f32.mrf.mxu0
    %1237 = vdwg.mxu0
    %v1239 = vrot.slane %v1235, 1
    %v1242 = vadd.f32 %v1158, %v1235
    %v1243 = vadd.f32 %v1159, %v1239
    %v1244 = vxor.u32 %v1242, 2147483648
    %v1245 = vxor.u32 %v1243, 2147483648
    %v1246 = vmul.f32 %v1244, 1.442695
    %v1247 = vpow.pop %v1246
    %v1248 = vmul.f32 %v1245, 1.442695
    %v1249 = vpow.pop %v1248
    %v1250 = vadd.f32 %v1247, 1.0
    %v1251 = vadd.f32 %v1249, 1.0
    %v1252 = vrcp.pop %v1250
    %v1253 = vmul.f32 1.0, %v1252
    %v1254 = vrcp.pop %v1251
    %v1255 = vmul.f32 1.0, %v1254
    %1256 = vrot.lane.b32.xlu0 %v1156, 96
    %v1257 = vpop.permute.xlu0 %1256
    %1258 = vrot.lane.b32.xlu0 %v1157, 96
    %v1259 = vpop.permute.xlu0 %1258
    %v1262 = vmul.f32 %v1253, %v1257
    %v1263 = vmul.f32 %v1255, %v1259
    %v1266 = vrot.slane %v1263, 7
    %v1267 = vsel %vm174, %v1266, %v1262
    %1268 = vrot.lane.b32.xlu0 %v1267, 96
    %v1269 = vpop.permute.xlu0 %1268
    %v1270 = vsel %vm66, %v1269, 0
    %1272 = vmatprep.subr.mxu0 0.0
    %1273 = vmatpush1.msra.mxu0 0.0
    %1274 = vmatprep.subr.mxu0 0.0
    %1275 = vmatpush1.msra.mxu0 0.0
    %1276 = vmatprep.subr.mxu0 0.0
    %1277 = vmatpush1.msra.mxu0 0.0
    %1278 = vmatprep.subr.mxu0 0.0
    %1279 = vmatpush1.msra.mxu0 0.0
    %1280 = vmatprep.subr.mxu0 0.0
    %1281 = vmatpush1.msra.mxu0 0.0
    %1282 = vmatprep.subr.mxu0 0.0
    %1283 = vmatpush1.msra.mxu0 0.0
    %1284 = vmatprep.subr.mxu0 0.0
    %1285 = vmatpush1.msra.mxu0 0.0
    %1286 = vmatprep.subr.mxu0 0.0
    %1287 = vmatpush1.msra.mxu0 0.0
    %1288 = vmatprep.subr.mxu0 0.0
    %1289 = vmatpush1.msra.mxu0 0.0
    %1290 = vmatprep.subr.mxu0 0.0
    %1291 = vmatpush1.msra.mxu0 0.0
    %1292 = vmatprep.subr.mxu0 0.0
    %1293 = vmatpush1.msra.mxu0 0.0
    %1294 = vmatprep.subr.mxu0 0.0
    %1295 = vmatpush1.msra.mxu0 0.0
    %1296 = vmatprep.subr.mxu0 0.0
    %1297 = vmatpush1.msra.mxu0 %v170
    %1298 = vmatprep.subr.mxu0 0.0
    %1299 = vmatpush1.msra.mxu0 %v169
    %1300 = vmatprep.subr.mxu0 0.0
    %1301 = vmatpush1.msra.mxu0 %v168
    %1302 = vmatprep.subr.mxu0 0.0
    %1303 = vmatpush1.msra.mxu0 %v167
    %1304 = vmatprep.subr.mxu0 0.0
    %1305 = vmatpush2.msra.mxu0 0.0
    %1306 = vmatprep.subr.mxu0 0.0
    %1307 = vmatpush2.msra.mxu0 0.0
    %1308 = vmatprep.subr.mxu0 0.0
    %1309 = vmatpush2.msra.mxu0 0.0
    %1310 = vmatprep.subr.mxu0 0.0
    %1311 = vmatpush2.msra.mxu0 0.0
    %1312 = vmatprep.subr.mxu0 0.0
    %1313 = vmatpush2.msra.mxu0 0.0
    %1314 = vmatprep.subr.mxu0 0.0
    %1315 = vmatpush2.msra.mxu0 0.0
    %1316 = vmatprep.subr.mxu0 0.0
    %1317 = vmatpush2.msra.mxu0 0.0
    %1318 = vmatprep.subr.mxu0 0.0
    %1319 = vmatpush2.msra.mxu0 0.0
    %1320 = vmatprep.subr.mxu0 0.0
    %1321 = vmatpush2.msra.mxu0 0.0
    %1322 = vmatprep.subr.mxu0 0.0
    %1323 = vmatpush2.msra.mxu0 0.0
    %1324 = vmatprep.subr.mxu0 0.0
    %1325 = vmatpush2.msra.mxu0 0.0
    %1326 = vmatprep.subr.mxu0 0.0
    %1327 = vmatpush2.msra.mxu0 0.0
    %1328 = vmatprep.subr.mxu0 0.0
    %1329 = vmatpush2.msra.mxu0 0.0
    %1330 = vmatprep.subr.mxu0 0.0
    %1331 = vmatpush2.msra.mxu0 0.0
    %1332 = vmatprep.subr.mxu0 0.0
    %1333 = vmatpush2.msra.mxu0 0.0
    %1334 = vmatprep.subr.mxu0 0.0
    %1335 = vmatpush2.msra.mxu0 0.0
    %1336 = vmatprep.mubr.f32.mxu0 0.0
    %1337 = vmatmul.mubr.f32.gmra.mxu0 %v1270
    %v1338 = vpop.f32.mrf.mxu0
    %v1339 = vadd.f32 0.0, %v1338
    %v1340 = vpop.f32.mrf.mxu0
    %1341 = vdwg.mxu0
    %v1343 = vrot.slane %v1339, 1
    %1344 = vrot.lane.b32.xlu0 %v1339, 64
    %v1345 = vpop.permute.xlu0 %1344
    %1346 = vrot.lane.b32.xlu0 %v1343, 64
    %v1347 = vpop.permute.xlu0 %1346
    %v1350 = vadd.f32 %v1158, %v1345
    %v1351 = vadd.f32 %v1159, %v1347
    %v1352 = vtanh.pop %v1350
    %v1353 = vtanh.pop %v1351
    %v1354 = vsub.f32 %v1156, %v1352
    %v1355 = vsub.f32 %v1157, %v1353
    %1358 = vrot.lane.b32.xlu0 %v1354, 64
    %v1359 = vpop.permute.xlu0 %1358
    %1360 = vrot.lane.b32.xlu0 %v1355, 64
    %v1361 = vpop.permute.xlu0 %1360
    %v1364 = vmul.f32 %v1253, %v1359
    %v1365 = vmul.f32 %v1255, %v1361
    %1368 = vrot.lane.b32.xlu0 %v1364, 64
    %v1369 = vpop.permute.xlu0 %1368
    %1370 = vrot.lane.b32.xlu0 %v1365, 64
    %v1371 = vpop.permute.xlu0 %1370
    %v1374 = vadd.f32 %v1352, %v1369
    %v1375 = vadd.f32 %v1353, %v1371
    %v1376 = vld [vmem:[#allocation6 + $0x6] sm:$0x1]
    %v1377 = vld [vmem:[#allocation6 + $0xe] sm:$0x1]
    %v1380 = vrot.slane %v1375, 7
    %v1381 = vsel %vm174, %v1380, %v1374
    %1382 = vrot.lane.b32.xlu0 %v1381, 64
    %v1383 = vpop.permute.xlu0 %1382
    %v1384 = vsel %vm66, %v1383, 0
    %1386 = vmatprep.subr.mxu0 0.0
    %1387 = vmatpush1.msra.mxu0 0.0
    %1388 = vmatprep.subr.mxu0 0.0
    %1389 = vmatpush1.msra.mxu0 0.0
    %1390 = vmatprep.subr.mxu0 0.0
    %1391 = vmatpush1.msra.mxu0 0.0
    %1392 = vmatprep.subr.mxu0 0.0
    %1393 = vmatpush1.msra.mxu0 0.0
    %1394 = vmatprep.subr.mxu0 0.0
    %1395 = vmatpush1.msra.mxu0 0.0
    %1396 = vmatprep.subr.mxu0 0.0
    %1397 = vmatpush1.msra.mxu0 0.0
    %1398 = vmatprep.subr.mxu0 0.0
    %1399 = vmatpush1.msra.mxu0 0.0
    %1400 = vmatprep.subr.mxu0 0.0
    %1401 = vmatpush1.msra.mxu0 0.0
    %1402 = vmatprep.subr.mxu0 0.0
    %1403 = vmatpush1.msra.mxu0 0.0
    %1404 = vmatprep.subr.mxu0 0.0
    %1405 = vmatpush1.msra.mxu0 0.0
    %1406 = vmatprep.subr.mxu0 0.0
    %1407 = vmatpush1.msra.mxu0 0.0
    %1408 = vmatprep.subr.mxu0 0.0
    %1409 = vmatpush1.msra.mxu0 0.0
    %1410 = vmatprep.subr.mxu0 0.0
    %1411 = vmatpush1.msra.mxu0 %v65
    %1412 = vmatprep.subr.mxu0 0.0
    %1413 = vmatpush1.msra.mxu0 %v64
    %1414 = vmatprep.subr.mxu0 0.0
    %1415 = vmatpush1.msra.mxu0 %v63
    %1416 = vmatprep.subr.mxu0 0.0
    %1417 = vmatpush1.msra.mxu0 %v62
    %1418 = vmatprep.subr.mxu0 0.0
    %1419 = vmatpush2.msra.mxu0 0.0
    %1420 = vmatprep.subr.mxu0 0.0
    %1421 = vmatpush2.msra.mxu0 0.0
    %1422 = vmatprep.subr.mxu0 0.0
    %1423 = vmatpush2.msra.mxu0 0.0
    %1424 = vmatprep.subr.mxu0 0.0
    %1425 = vmatpush2.msra.mxu0 0.0
    %1426 = vmatprep.subr.mxu0 0.0
    %1427 = vmatpush2.msra.mxu0 0.0
    %1428 = vmatprep.subr.mxu0 0.0
    %1429 = vmatpush2.msra.mxu0 0.0
    %1430 = vmatprep.subr.mxu0 0.0
    %1431 = vmatpush2.msra.mxu0 0.0
    %1432 = vmatprep.subr.mxu0 0.0
    %1433 = vmatpush2.msra.mxu0 0.0
    %1434 = vmatprep.subr.mxu0 0.0
    %1435 = vmatpush2.msra.mxu0 0.0
    %1436 = vmatprep.subr.mxu0 0.0
    %1437 = vmatpush2.msra.mxu0 0.0
    %1438 = vmatprep.subr.mxu0 0.0
    %1439 = vmatpush2.msra.mxu0 0.0
    %1440 = vmatprep.subr.mxu0 0.0
    %1441 = vmatpush2.msra.mxu0 0.0
    %1442 = vmatprep.subr.mxu0 0.0
    %1443 = vmatpush2.msra.mxu0 0.0
    %1444 = vmatprep.subr.mxu0 0.0
    %1445 = vmatpush2.msra.mxu0 0.0
    %1446 = vmatprep.subr.mxu0 0.0
    %1447 = vmatpush2.msra.mxu0 0.0
    %1448 = vmatprep.subr.mxu0 0.0
    %1449 = vmatpush2.msra.mxu0 0.0
    %1450 = vmatprep.mubr.f32.mxu0 0.0
    %1451 = vmatmul.mubr.f32.gmra.mxu0 %v1384
    %v1452 = vpop.f32.mrf.mxu0
    %v1453 = vadd.f32 0.0, %v1452
    %v1454 = vpop.f32.mrf.mxu0
    %1455 = vdwg.mxu0
    %v1457 = vrot.slane %v1453, 1
    %v1460 = vadd.f32 %v1376, %v1453
    %v1461 = vadd.f32 %v1377, %v1457
    %v1462 = vxor.u32 %v1460, 2147483648
    %v1463 = vxor.u32 %v1461, 2147483648
    %v1464 = vmul.f32 %v1462, 1.442695
    %v1465 = vpow.pop %v1464
    %v1466 = vmul.f32 %v1463, 1.442695
    %v1467 = vpow.pop %v1466
    %v1468 = vadd.f32 %v1465, 1.0
    %v1469 = vadd.f32 %v1467, 1.0
    %v1470 = vrcp.pop %v1468
    %v1471 = vmul.f32 1.0, %v1470
    %v1472 = vrcp.pop %v1469
    %v1473 = vmul.f32 1.0, %v1472
    %1474 = vrot.lane.b32.xlu0 %v1374, 96
    %v1475 = vpop.permute.xlu0 %1474
    %1476 = vrot.lane.b32.xlu0 %v1375, 96
    %v1477 = vpop.permute.xlu0 %1476
    %v1480 = vmul.f32 %v1471, %v1475
    %v1481 = vmul.f32 %v1473, %v1477
    %v1484 = vrot.slane %v1481, 7
    %v1485 = vsel %vm174, %v1484, %v1480
    %1486 = vrot.lane.b32.xlu0 %v1485, 96
    %v1487 = vpop.permute.xlu0 %1486
    %v1488 = vsel %vm66, %v1487, 0
    %1490 = vmatprep.subr.mxu0 0.0
    %1491 = vmatpush1.msra.mxu0 0.0
    %1492 = vmatprep.subr.mxu0 0.0
    %1493 = vmatpush1.msra.mxu0 0.0
    %1494 = vmatprep.subr.mxu0 0.0
    %1495 = vmatpush1.msra.mxu0 0.0
    %1496 = vmatprep.subr.mxu0 0.0
    %1497 = vmatpush1.msra.mxu0 0.0
    %1498 = vmatprep.subr.mxu0 0.0
    %1499 = vmatpush1.msra.mxu0 0.0
    %1500 = vmatprep.subr.mxu0 0.0
    %1501 = vmatpush1.msra.mxu0 0.0
    %1502 = vmatprep.subr.mxu0 0.0
    %1503 = vmatpush1.msra.mxu0 0.0
    %1504 = vmatprep.subr.mxu0 0.0
    %1505 = vmatpush1.msra.mxu0 0.0
    %1506 = vmatprep.subr.mxu0 0.0
    %1507 = vmatpush1.msra.mxu0 0.0
    %1508 = vmatprep.subr.mxu0 0.0
    %1509 = vmatpush1.msra.mxu0 0.0
    %1510 = vmatprep.subr.mxu0 0.0
    %1511 = vmatpush1.msra.mxu0 0.0
    %1512 = vmatprep.subr.mxu0 0.0
    %1513 = vmatpush1.msra.mxu0 0.0
    %1514 = vmatprep.subr.mxu0 0.0
    %1515 = vmatpush1.msra.mxu0 %v170
    %1516 = vmatprep.subr.mxu0 0.0
    %1517 = vmatpush1.msra.mxu0 %v169
    %1518 = vmatprep.subr.mxu0 0.0
    %1519 = vmatpush1.msra.mxu0 %v168
    %1520 = vmatprep.subr.mxu0 0.0
    %1521 = vmatpush1.msra.mxu0 %v167
    %1522 = vmatprep.subr.mxu0 0.0
    %1523 = vmatpush2.msra.mxu0 0.0
    %1524 = vmatprep.subr.mxu0 0.0
    %1525 = vmatpush2.msra.mxu0 0.0
    %1526 = vmatprep.subr.mxu0 0.0
    %1527 = vmatpush2.msra.mxu0 0.0
    %1528 = vmatprep.subr.mxu0 0.0
    %1529 = vmatpush2.msra.mxu0 0.0
    %1530 = vmatprep.subr.mxu0 0.0
    %1531 = vmatpush2.msra.mxu0 0.0
    %1532 = vmatprep.subr.mxu0 0.0
    %1533 = vmatpush2.msra.mxu0 0.0
    %1534 = vmatprep.subr.mxu0 0.0
    %1535 = vmatpush2.msra.mxu0 0.0
    %1536 = vmatprep.subr.mxu0 0.0
    %1537 = vmatpush2.msra.mxu0 0.0
    %1538 = vmatprep.subr.mxu0 0.0
    %1539 = vmatpush2.msra.mxu0 0.0
    %1540 = vmatprep.subr.mxu0 0.0
    %1541 = vmatpush2.msra.mxu0 0.0
    %1542 = vmatprep.subr.mxu0 0.0
    %1543 = vmatpush2.msra.mxu0 0.0
    %1544 = vmatprep.subr.mxu0 0.0
    %1545 = vmatpush2.msra.mxu0 0.0
    %1546 = vmatprep.subr.mxu0 0.0
    %1547 = vmatpush2.msra.mxu0 0.0
    %1548 = vmatprep.subr.mxu0 0.0
    %1549 = vmatpush2.msra.mxu0 0.0
    %1550 = vmatprep.subr.mxu0 0.0
    %1551 = vmatpush2.msra.mxu0 0.0
    %1552 = vmatprep.subr.mxu0 0.0
    %1553 = vmatpush2.msra.mxu0 0.0
    %1554 = vmatprep.mubr.f32.mxu0 0.0
    %1555 = vmatmul.mubr.f32.gmra.mxu0 %v1488
    %v1556 = vpop.f32.mrf.mxu0
    %v1557 = vadd.f32 0.0, %v1556
    %v1558 = vpop.f32.mrf.mxu0
    %1559 = vdwg.mxu0
    %v1561 = vrot.slane %v1557, 1
    %1562 = vrot.lane.b32.xlu0 %v1557, 64
    %v1563 = vpop.permute.xlu0 %1562
    %1564 = vrot.lane.b32.xlu0 %v1561, 64
    %v1565 = vpop.permute.xlu0 %1564
    %v1568 = vadd.f32 %v1376, %v1563
    %v1569 = vadd.f32 %v1377, %v1565
    %v1570 = vtanh.pop %v1568
    %v1571 = vtanh.pop %v1569
    %v1572 = vsub.f32 %v1374, %v1570
    %v1573 = vsub.f32 %v1375, %v1571
    %1576 = vrot.lane.b32.xlu0 %v1572, 64
    %v1577 = vpop.permute.xlu0 %1576
    %1578 = vrot.lane.b32.xlu0 %v1573, 64
    %v1579 = vpop.permute.xlu0 %1578
    %v1582 = vmul.f32 %v1471, %v1577
    %v1583 = vmul.f32 %v1473, %v1579
    %1586 = vrot.lane.b32.xlu0 %v1582, 64
    %v1587 = vpop.permute.xlu0 %1586
    %1588 = vrot.lane.b32.xlu0 %v1583, 64
    %v1589 = vpop.permute.xlu0 %1588
    %v1592 = vadd.f32 %v1570, %v1587
    %v1593 = vadd.f32 %v1571, %v1589
    %v1594 = vld [vmem:[#allocation6 + $0x7] sm:$0x1]
    %v1595 = vld [vmem:[#allocation6 + $0xf] sm:$0x1]
    %v1598 = vrot.slane %v1593, 7
    %v1599 = vsel %vm174, %v1598, %v1592
    %1600 = vrot.lane.b32.xlu0 %v1599, 64
    %v1601 = vpop.permute.xlu0 %1600
    %v1602 = vsel %vm66, %v1601, 0
    %1604 = vmatprep.subr.mxu0 0.0
    %1605 = vmatpush1.msra.mxu0 0.0
    %1606 = vmatprep.subr.mxu0 0.0
    %1607 = vmatpush1.msra.mxu0 0.0
    %1608 = vmatprep.subr.mxu0 0.0
    %1609 = vmatpush1.msra.mxu0 0.0
    %1610 = vmatprep.subr.mxu0 0.0
    %1611 = vmatpush1.msra.mxu0 0.0
    %1612 = vmatprep.subr.mxu0 0.0
    %1613 = vmatpush1.msra.mxu0 0.0
    %1614 = vmatprep.subr.mxu0 0.0
    %1615 = vmatpush1.msra.mxu0 0.0
    %1616 = vmatprep.subr.mxu0 0.0
    %1617 = vmatpush1.msra.mxu0 0.0
    %1618 = vmatprep.subr.mxu0 0.0
    %1619 = vmatpush1.msra.mxu0 0.0
    %1620 = vmatprep.subr.mxu0 0.0
    %1621 = vmatpush1.msra.mxu0 0.0
    %1622 = vmatprep.subr.mxu0 0.0
    %1623 = vmatpush1.msra.mxu0 0.0
    %1624 = vmatprep.subr.mxu0 0.0
    %1625 = vmatpush1.msra.mxu0 0.0
    %1626 = vmatprep.subr.mxu0 0.0
    %1627 = vmatpush1.msra.mxu0 0.0
    %1628 = vmatprep.subr.mxu0 0.0
    %1629 = vmatpush1.msra.mxu0 %v65
    %1630 = vmatprep.subr.mxu0 0.0
    %1631 = vmatpush1.msra.mxu0 %v64
    %1632 = vmatprep.subr.mxu0 0.0
    %1633 = vmatpush1.msra.mxu0 %v63
    %1634 = vmatprep.subr.mxu0 0.0
    %1635 = vmatpush1.msra.mxu0 %v62
    %1636 = vmatprep.subr.mxu0 0.0
    %1637 = vmatpush2.msra.mxu0 0.0
    %1638 = vmatprep.subr.mxu0 0.0
    %1639 = vmatpush2.msra.mxu0 0.0
    %1640 = vmatprep.subr.mxu0 0.0
    %1641 = vmatpush2.msra.mxu0 0.0
    %1642 = vmatprep.subr.mxu0 0.0
    %1643 = vmatpush2.msra.mxu0 0.0
    %1644 = vmatprep.subr.mxu0 0.0
    %1645 = vmatpush2.msra.mxu0 0.0
    %1646 = vmatprep.subr.mxu0 0.0
    %1647 = vmatpush2.msra.mxu0 0.0
    %1648 = vmatprep.subr.mxu0 0.0
    %1649 = vmatpush2.msra.mxu0 0.0
    %1650 = vmatprep.subr.mxu0 0.0
    %1651 = vmatpush2.msra.mxu0 0.0
    %1652 = vmatprep.subr.mxu0 0.0
    %1653 = vmatpush2.msra.mxu0 0.0
    %1654 = vmatprep.subr.mxu0 0.0
    %1655 = vmatpush2.msra.mxu0 0.0
    %1656 = vmatprep.subr.mxu0 0.0
    %1657 = vmatpush2.msra.mxu0 0.0
    %1658 = vmatprep.subr.mxu0 0.0
    %1659 = vmatpush2.msra.mxu0 0.0
    %1660 = vmatprep.subr.mxu0 0.0
    %1661 = vmatpush2.msra.mxu0 0.0
    %1662 = vmatprep.subr.mxu0 0.0
    %1663 = vmatpush2.msra.mxu0 0.0
    %1664 = vmatprep.subr.mxu0 0.0
    %1665 = vmatpush2.msra.mxu0 0.0
    %1666 = vmatprep.subr.mxu0 0.0
    %1667 = vmatpush2.msra.mxu0 0.0
    %1668 = vmatprep.mubr.f32.mxu0 0.0
    %1669 = vmatmul.mubr.f32.gmra.mxu0 %v1602
    %v1670 = vpop.f32.mrf.mxu0
    %v1671 = vadd.f32 0.0, %v1670
    %v1672 = vpop.f32.mrf.mxu0
    %1673 = vdwg.mxu0
    %v1675 = vrot.slane %v1671, 1
    %v1678 = vadd.f32 %v1594, %v1671
    %v1679 = vadd.f32 %v1595, %v1675
    %v1680 = vxor.u32 %v1678, 2147483648
    %v1681 = vxor.u32 %v1679, 2147483648
    %v1682 = vmul.f32 %v1680, 1.442695
    %v1683 = vpow.pop %v1682
    %v1684 = vmul.f32 %v1681, 1.442695
    %v1685 = vpow.pop %v1684
    %v1686 = vadd.f32 %v1683, 1.0
    %v1687 = vadd.f32 %v1685, 1.0
    %v1688 = vrcp.pop %v1686
    %v1689 = vmul.f32 1.0, %v1688
    %v1690 = vrcp.pop %v1687
    %v1691 = vmul.f32 1.0, %v1690
    %1692 = vrot.lane.b32.xlu0 %v1592, 96
    %v1693 = vpop.permute.xlu0 %1692
    %1694 = vrot.lane.b32.xlu0 %v1593, 96
    %v1695 = vpop.permute.xlu0 %1694
    %v1698 = vmul.f32 %v1689, %v1693
    %v1699 = vmul.f32 %v1691, %v1695
    %v1702 = vrot.slane %v1699, 7
    %v1703 = vsel %vm174, %v1702, %v1698
    %1704 = vrot.lane.b32.xlu0 %v1703, 96
    %v1705 = vpop.permute.xlu0 %1704
    %v1706 = vsel %vm66, %v1705, 0
    %1708 = vmatprep.subr.mxu0 0.0
    %1709 = vmatpush1.msra.mxu0 0.0
    %1710 = vmatprep.subr.mxu0 0.0
    %1711 = vmatpush1.msra.mxu0 0.0
    %1712 = vmatprep.subr.mxu0 0.0
    %1713 = vmatpush1.msra.mxu0 0.0
    %1714 = vmatprep.subr.mxu0 0.0
    %1715 = vmatpush1.msra.mxu0 0.0
    %1716 = vmatprep.subr.mxu0 0.0
    %1717 = vmatpush1.msra.mxu0 0.0
    %1718 = vmatprep.subr.mxu0 0.0
    %1719 = vmatpush1.msra.mxu0 0.0
    %1720 = vmatprep.subr.mxu0 0.0
    %1721 = vmatpush1.msra.mxu0 0.0
    %1722 = vmatprep.subr.mxu0 0.0
    %1723 = vmatpush1.msra.mxu0 0.0
    %1724 = vmatprep.subr.mxu0 0.0
    %1725 = vmatpush1.msra.mxu0 0.0
    %1726 = vmatprep.subr.mxu0 0.0
    %1727 = vmatpush1.msra.mxu0 0.0
    %1728 = vmatprep.subr.mxu0 0.0
    %1729 = vmatpush1.msra.mxu0 0.0
    %1730 = vmatprep.subr.mxu0 0.0
    %1731 = vmatpush1.msra.mxu0 0.0
    %1732 = vmatprep.subr.mxu0 0.0
    %1733 = vmatpush1.msra.mxu0 %v170
    %1734 = vmatprep.subr.mxu0 0.0
    %1735 = vmatpush1.msra.mxu0 %v169
    %1736 = vmatprep.subr.mxu0 0.0
    %1737 = vmatpush1.msra.mxu0 %v168
    %1738 = vmatprep.subr.mxu0 0.0
    %1739 = vmatpush1.msra.mxu0 %v167
    %1740 = vmatprep.subr.mxu0 0.0
    %1741 = vmatpush2.msra.mxu0 0.0
    %1742 = vmatprep.subr.mxu0 0.0
    %1743 = vmatpush2.msra.mxu0 0.0
    %1744 = vmatprep.subr.mxu0 0.0
    %1745 = vmatpush2.msra.mxu0 0.0
    %1746 = vmatprep.subr.mxu0 0.0
    %1747 = vmatpush2.msra.mxu0 0.0
    %1748 = vmatprep.subr.mxu0 0.0
    %1749 = vmatpush2.msra.mxu0 0.0
    %1750 = vmatprep.subr.mxu0 0.0
    %1751 = vmatpush2.msra.mxu0 0.0
    %1752 = vmatprep.subr.mxu0 0.0
    %1753 = vmatpush2.msra.mxu0 0.0
    %1754 = vmatprep.subr.mxu0 0.0
    %1755 = vmatpush2.msra.mxu0 0.0
    %1756 = vmatprep.subr.mxu0 0.0
    %1757 = vmatpush2.msra.mxu0 0.0
    %1758 = vmatprep.subr.mxu0 0.0
    %1759 = vmatpush2.msra.mxu0 0.0
    %1760 = vmatprep.subr.mxu0 0.0
    %1761 = vmatpush2.msra.mxu0 0.0
    %1762 = vmatprep.subr.mxu0 0.0
    %1763 = vmatpush2.msra.mxu0 0.0
    %1764 = vmatprep.subr.mxu0 0.0
    %1765 = vmatpush2.msra.mxu0 0.0
    %1766 = vmatprep.subr.mxu0 0.0
    %1767 = vmatpush2.msra.mxu0 0.0
    %1768 = vmatprep.subr.mxu0 0.0
    %1769 = vmatpush2.msra.mxu0 0.0
    %1770 = vmatprep.subr.mxu0 0.0
    %1771 = vmatpush2.msra.mxu0 0.0
    %1772 = vmatprep.mubr.f32.mxu0 0.0
    %1773 = vmatmul.mubr.f32.gmra.mxu0 %v1706
    %v1774 = vpop.f32.mrf.mxu0
    %v1775 = vadd.f32 0.0, %v1774
    %v1776 = vpop.f32.mrf.mxu0
    %1777 = vdwg.mxu0
    %v1779 = vrot.slane %v1775, 1
    %1780 = vrot.lane.b32.xlu0 %v1775, 64
    %v1781 = vpop.permute.xlu0 %1780
    %1782 = vrot.lane.b32.xlu0 %v1779, 64
    %v1783 = vpop.permute.xlu0 %1782
    %v1786 = vadd.f32 %v1594, %v1781
    %v1787 = vadd.f32 %v1595, %v1783
    %v1788 = vtanh.pop %v1786
    %v1789 = vtanh.pop %v1787
    %v1790 = vsub.f32 %v1592, %v1788
    %v1791 = vsub.f32 %v1593, %v1789
    %1794 = vrot.lane.b32.xlu0 %v1790, 64
    %v1795 = vpop.permute.xlu0 %1794
    %1796 = vrot.lane.b32.xlu0 %v1791, 64
    %v1797 = vpop.permute.xlu0 %1796
    %v1800 = vmul.f32 %v1689, %v1795
    %v1801 = vmul.f32 %v1691, %v1797
    %1804 = vrot.lane.b32.xlu0 %v1800, 64
    %v1805 = vpop.permute.xlu0 %1804
    %1806 = vrot.lane.b32.xlu0 %v1801, 64
    %v1807 = vpop.permute.xlu0 %1806
    %v1810 = vadd.f32 %v1788, %v1805
    %v1811 = vadd.f32 %v1789, %v1807
    %v1814 = vrot.slane %v1811, 7
    %v1815 = vsel %vm174, %v1814, %v1810
    %1816 = vrot.lane.b32.xlu0 %v1815, 64
    %v1817 = vpop.permute.xlu0 %1816
    %vm1819 = vcmask 254976
    %1820 = vst.msk [vmem:[#allocation4] sm:$0x3] %vm1819, %v1817
    // Predicated region
    $region22: #{tpu_custom_call.1} parent=1 // pred_check
      %p1821 = pneg %p25
    $region23: #{tpu_custom_call.1} parent=1 // pred_check_branch
      %1823 = sbr.rel (%p1821) target = $region25
    $region24: #{tpu_custom_call.1} parent=1 // pred_region
      %1824 = vst.msk [vmem:[#allocation9] sm:$0x3] %vm1819, %v1817
    $region25: #{tpu_custom_call.1} parent=1 // pred_fallthru
      _
    // Predicated region
    $region26: #{tpu_custom_call.1} parent=1 // pred_check
      _
    $region27: #{tpu_custom_call.1} parent=1 // pred_check_branch
      %1826 = sbr.rel (0) target = $region29
    $region28: #{tpu_custom_call.1} parent=1 // pred_region
      %s1828 = ssub.s32 32, 32
      %1829 = vsyncadd [#allocation8], %s1828
      %s1831 = sshll.u32 [#allocation9], 4
      %s1832 = int_to_ptr.vmem [resolvable:$true] %s1831
      %1834 = dma.vmem_to_hbm [thread:$0]  %s1832, 32, %s3, [#allocation8]
    $region29: #{tpu_custom_call.1} parent=1 // pred_fallthru
      _
    // Predicated region
    $region30: #{tpu_custom_call.1} parent=1 // pred_check
      _
    $region31: #{tpu_custom_call.1} parent=1 // pred_check_branch
      %1836 = sbr.rel (0) target = $region33
    $region32: #{tpu_custom_call.1} parent=1 // pred_region
      %1837 = dma.done [#allocation8], 32
    $region33: #{tpu_custom_call.1} parent=1 // pred_fallthru
      _
    %1838 = vsyncpa [#allocation7], 1
    %1839 = vsyncpa [#allocation8], 1
  %1840 = vsyncmov [#allocation5]
  %s1841 = vpop.sfrf %1840
  %p1842 = scmp.eq.s32.totalorder %s1841, 0
  %p1843 = pneg %p1842
  %1845 = shalt.err (%p1843)
  %s1846 = scalar_lea.sflag [#allocation5], 1
  %1847 = vsyncmov %s1846
  %s1848 = vpop.sfrf %1847
  %p1849 = scmp.eq.s32.totalorder %s1848, 0
  %p1850 = pneg %p1849
  %1852 = shalt.err (%p1850)

</llo_original>
